<compile_context>
chip_gen: v6e
topology: v6e:2x2x1
jax: 0.10.0
libtpu: 0.0.40
codegen_flags: <defaults>
</compile_context>

<pallas_src>
import functools

import jax
import jax.numpy as jnp
from jax import lax
from jax.experimental import pallas as pl
from jax.experimental.pallas import tpu as pltpu

CLIP_EMBED_DIM = 512
ADAPTER_HIDDEN_DIM = 256
ADAPTER_OUTPUT_DIM = 128
NUM_PROMPTS = 6
NUM_CLASSES = 2
SIMS_PAD = 128      # prompt-similarity block padded to one lane group
LOGITS_PAD = 128    # lane-dense logits slab (first NUM_CLASSES columns valid)


def _forgery_kernel(vis_ref, wab_ref, ba1_ref, wa2_ref, ba2_ref,
                    wc1a_ref, wlin_ref, wc1b_std_ref, wc1b_max_ref, bc1_ref,
                    wc2_ref, bc2_ref, wc3_ref, bc3_ref,
                    logits_ref, proj_ref):
    f32 = jnp.float32
    bf16 = jnp.bfloat16
    eps = 1e-12  # matches F.normalize default eps

    vis = vis_ref[...].astype(f32)                                  # (TB, 512)

    # --- L2 normalization (F.normalize, p=2, dim=-1) via rsqrt-multiply ---
    # max(||x||, eps) == sqrt(max(sum(x^2), eps^2))
    sumsq = jnp.sum(vis * vis, axis=-1, keepdims=True)
    vis_n = vis * lax.rsqrt(jnp.maximum(sumsq, eps * eps))
    vis_nb = vis_n.astype(bf16)

    # --- fused adapter-layer-1 + prompt-similarity matmul ---
    # RHS = [wa1 (512x256) | txt_n^T (512x6) | zero-pad] -> (512, 384)
    hs = jnp.dot(vis_nb, wab_ref[...], preferred_element_type=f32)  # (TB, 384)
    h = jnp.maximum(hs[:, :ADAPTER_HIDDEN_DIM] + ba1_ref[...], 0.0)  # (TB, 256)
    sims = hs[:, ADAPTER_HIDDEN_DIM:]            # (TB, 128), cols >= 6 are zero

    # --- text-derived statistics (f32, lane-masked over the 128-wide block) ---
    col = lax.broadcasted_iota(jnp.int32, sims.shape, 1)
    valid = col < NUM_PROMPTS
    even = valid & ((col % 2) == 0)
    real = jnp.sum(jnp.where(even, sims, 0.0), axis=-1, keepdims=True) / 3.0
    ssum = jnp.sum(jnp.where(valid, sims, 0.0), axis=-1, keepdims=True)
    mean = ssum / float(NUM_PROMPTS)
    # torch.std default is unbiased (ddof=1): divide by (N-1) = 5
    std = jnp.sqrt(jnp.sum(jnp.where(valid, (sims - mean) ** 2, 0.0),
                           axis=-1, keepdims=True) / (NUM_PROMPTS - 1))
    smax = jnp.max(jnp.where(valid, sims, -jnp.inf), axis=-1, keepdims=True)
    # real/fake/mean/diff contributions to the classifier are linear in sims and
    # are folded into the precomputed `wlin` matmul below.

    # --- projection adapter layer 2 (Linear->ReLU); dropout = identity ---
    proj = jnp.dot(h.astype(bf16), wa2_ref[...],
                   preferred_element_type=f32) + ba2_ref[...]
    proj = jnp.maximum(proj, 0.0)                                   # (TB, 128)
    proj_ref[...] = proj.astype(proj_ref.dtype)

    # --- classification head layer 1 ---
    # concat([proj, text_feats]) @ W1 ==
    #   proj @ W1_visual + sims @ (T @ W1_text[:4]) + std*W1_text[4] + max*W1_text[5]
    h1 = jnp.dot(proj.astype(bf16), wc1a_ref[...], preferred_element_type=f32)
    h1 = h1 + jnp.dot(sims.astype(bf16), wlin_ref[...], preferred_element_type=f32)
    h1 = h1 + bc1_ref[...] + std * wc1b_std_ref[...] + smax * wc1b_max_ref[...]
    h1 = jnp.maximum(h1, 0.0)                                       # (TB, 256)

    h2 = jnp.dot(h1.astype(bf16), wc2_ref[...],
                 preferred_element_type=f32) + bc2_ref[...]
    h2 = jnp.maximum(h2, 0.0)                                       # (TB, 64)

    # lane-dense padded logits (only first NUM_CLASSES columns are meaningful)
    logits = jnp.dot(h2.astype(bf16), wc3_ref[...],
                     preferred_element_type=f32) + bc3_ref[...]
    logits_ref[...] = logits.astype(logits_ref.dtype)               # (TB, 128)


@jax.jit
def forgery_detector_forward(visual_embeddings, textual_embeddings, params):
    """Runs the full trainable path of ForgeryDetector in one Pallas kernel.

    Args:
      visual_embeddings:  (B, 512) f32 CLIP image embeddings (pre-normalization).
      textual_embeddings: (6, 512) f32 CLIP text embeddings  (pre-normalization).
      params: dict of kernel-ready weights (see init_params).

    Returns:
      (logits (B, 2), projected_visuals (B, 128))
    """
    f32, bf16 = jnp.float32, jnp.bfloat16
    eps = 1e-12
    B = visual_embeddings.shape[0]

    # Hoisted once per call: normalize the (6, 512) text embeddings and build the
    # fused adapter-1 / similarity RHS  [wa1 | txt_n^T | 0-pad] -> (512, 384) bf16.
    txt = textual_embeddings.astype(f32)
    tssq = jnp.sum(txt * txt, axis=-1, keepdims=True)
    txt_n = txt * lax.rsqrt(jnp.maximum(tssq, eps * eps))
    wab = jnp.zeros((CLIP_EMBED_DIM, ADAPTER_HIDDEN_DIM + SIMS_PAD), bf16)
    wab = wab.at[:, :ADAPTER_HIDDEN_DIM].set(params["wa1"])
    wab = wab.at[:, ADAPTER_HIDDEN_DIM:ADAPTER_HIDDEN_DIM + NUM_PROMPTS].set(
        txt_n.T.astype(bf16))

    # Batch tiling: 256-row tiles (MXU M-dim friendly on v6e/v7x) for large B,
    # a single 8-row-aligned tile for tiny B (avoid per-step overhead / padding).
    if B >= 256:
        tile_b = 256
    else:
        tile_b = max(8, -(-B // 8) * 8)
    padded_b = -(-B // tile_b) * tile_b
    vis = visual_embeddings.astype(f32)
    if padded_b != B:
        vis = jnp.pad(vis, ((0, padded_b - B), (0, 0)))
    grid = (padded_b // tile_b,)

    weight_inputs = (
        wab, params["ba1"], params["wa2"], params["ba2"],
        params["wc1a"], params["wlin"], params["wc1b_std"], params["wc1b_max"],
        params["bc1"], params["wc2"], params["bc2"], params["wc3p"], params["bc3p"],
    )

    def pinned(a):
        # full-array block, revisited every grid step -> stays VMEM resident
        return pl.BlockSpec(a.shape, lambda i: (0, 0))

    in_specs = ([pl.BlockSpec((tile_b, CLIP_EMBED_DIM), lambda i: (i, 0))]
                + [pinned(a) for a in weight_inputs])
    out_specs = (
        pl.BlockSpec((tile_b, LOGITS_PAD), lambda i: (i, 0)),
        pl.BlockSpec((tile_b, ADAPTER_OUTPUT_DIM), lambda i: (i, 0)),
    )
    out_shape = (
        jax.ShapeDtypeStruct((padded_b, LOGITS_PAD), f32),
        jax.ShapeDtypeStruct((padded_b, ADAPTER_OUTPUT_DIM), f32),
    )

    # VMEM budget from actual buffer sizes (double-buffered) + headroom for
    # intermediates; well under the 64 MiB physical VMEM of a v7x TensorCore.
    def _nbytes(a):
        return a.size * jnp.dtype(a.dtype).itemsize
    weight_bytes = sum(_nbytes(a) for a in weight_inputs)
    io_bytes = tile_b * (CLIP_EMBED_DIM + LOGITS_PAD + ADAPTER_OUTPUT_DIM) * 4
    vmem_limit = int(min(32 << 20, 2 * (weight_bytes + io_bytes) + (8 << 20)))

    flops = 2 * padded_b * (
        CLIP_EMBED_DIM * (ADAPTER_HIDDEN_DIM + SIMS_PAD)   # fused adapter1 + sims
        + ADAPTER_HIDDEN_DIM * ADAPTER_OUTPUT_DIM          # adapter layer 2
        + ADAPTER_OUTPUT_DIM * 256                         # head layer 1 (visual)
        + SIMS_PAD * 256                                   # head layer 1 (text)
        + 256 * 64                                         # head layer 2
        + 64 * LOGITS_PAD)                                 # head layer 3 (padded)
    cost = pl.CostEstimate(
        flops=flops,
        transcendentals=2 * padded_b,                      # rsqrt + sqrt per row
        bytes_accessed=int(weight_bytes + padded_b * (CLIP_EMBED_DIM * 4
                                                      + LOGITS_PAD * 4
                                                      + ADAPTER_OUTPUT_DIM * 4)),
    )

    logits_pad, proj = pl.pallas_call(
        _forgery_kernel,
        grid=grid,
        out_shape=out_shape,
        in_specs=in_specs,
        out_specs=out_specs,
        compiler_params=pltpu.CompilerParams(
            dimension_semantics=("parallel",),
            vmem_limit_bytes=vmem_limit),
        cost_estimate=cost,
    )(vis, *weight_inputs)

    return logits_pad[:B, :NUM_CLASSES], proj[:B]


def init_params(key):
    """Deterministic parameter init (stands in for nn.Linear init), pre-packed
    into the kernel-ready bf16/padded layouts."""
    ks = jax.random.split(key, 5)
    cin = ADAPTER_OUTPUT_DIM + NUM_PROMPTS  # 134, classifier input dim
    f32, bf16 = jnp.float32, jnp.bfloat16

    def lin(k, fan_in, fan_out):
        bound = 1.0 / jnp.sqrt(float(fan_in))
        kw, kb = jax.random.split(k)
        w = jax.random.uniform(kw, (fan_in, fan_out), f32, -bound, bound)
        b = jax.random.uniform(kb, (1, fan_out), f32, -bound, bound)
        return w, b

    wa1, ba1 = lin(ks[0], CLIP_EMBED_DIM, ADAPTER_HIDDEN_DIM)       # 512 -> 256
    wa2, ba2 = lin(ks[1], ADAPTER_HIDDEN_DIM, ADAPTER_OUTPUT_DIM)   # 256 -> 128
    wc1, bc1 = lin(ks[2], cin, 256)                                 # 134 -> 256
    wc2, bc2 = lin(ks[3], 256, 64)                                  # 256 -> 64
    wc3, bc3 = lin(ks[4], 64, NUM_CLASSES)                          # 64  -> 2

    # First classifier weight split: rows 0..127 act on projected visuals,
    # rows 128..133 act on [real, fake, mean, diff, std, max] (this order must
    # match the PyTorch concat order of text_derived_features).
    wc1a = wc1[:ADAPTER_OUTPUT_DIM, :]                              # (128, 256)
    wc1b = wc1[ADAPTER_OUTPUT_DIM:, :]                              # (6, 256)

    # Fold the 4 linear-in-sims features into one (sims -> hidden) matrix:
    #   [real, fake, mean, diff] = sims @ T,  W_lin = T @ wc1b[:4]   (6, 256)
    T = jnp.zeros((NUM_PROMPTS, 4), f32)
    even = jnp.arange(0, NUM_PROMPTS, 2)
    odd = jnp.arange(1, NUM_PROMPTS, 2)
    T = T.at[even, 0].set(1.0 / 3.0)             # real = mean of even prompts
    T = T.at[odd, 1].set(1.0 / 3.0)              # fake = mean of odd prompts
    T = T.at[:, 2].set(1.0 / NUM_PROMPTS)        # mean over all prompts
    T = T.at[even, 3].set(1.0 / 3.0)             # diff = real - fake
    T = T.at[odd, 3].set(-1.0 / 3.0)
    wlin = jnp.zeros((SIMS_PAD, 256), f32).at[:NUM_PROMPTS, :].set(T @ wc1b[:4, :])

    # Lane-dense padded final layer (only first NUM_CLASSES columns non-zero).
    wc3p = jnp.zeros((64, LOGITS_PAD), f32).at[:, :NUM_CLASSES].set(wc3)
    bc3p = jnp.zeros((1, LOGITS_PAD), f32).at[:, :NUM_CLASSES].set(bc3)

    return dict(
        wa1=wa1.astype(bf16), ba1=ba1,
        wa2=wa2.astype(bf16), ba2=ba2,
        wc1a=wc1a.astype(bf16), wlin=wlin.astype(bf16),
        wc1b_std=wc1b[4:5, :], wc1b_max=wc1b[5:6, :], bc1=bc1,
        wc2=wc2.astype(bf16), bc2=bc2,
        wc3p=wc3p.astype(bf16), bc3p=bc3p,
    )


if __name__ == "__main__":
    key = jax.random.PRNGKey(0)
    k_img, k_stub, k_txt, k_par = jax.random.split(key, 4)

    # Small synthetic "preprocessed image batch" (NCHW, like the PyTorch module).
    B, C, H, W = 2, 3, 32, 32
    image_batch = jax.random.normal(k_img, (B, C, H, W), jnp.float32)

    # TODO(synk): stub for the frozen CLIP encoders — deterministic random
    # projection producing 512-d visual embeddings, and random text embeddings.
    w_stub = jax.random.normal(k_stub, (C * H * W, CLIP_EMBED_DIM), jnp.float32) * 0.02
    visual_embeddings = image_batch.reshape(B, -1) @ w_stub          # (B, 512)
    textual_embeddings = jax.random.normal(k_txt, (NUM_PROMPTS, CLIP_EMBED_DIM),
                                           jnp.float32)              # (6, 512)

    params = init_params(k_par)

    logits, projected_visuals = forgery_detector_forward(
        visual_embeddings, textual_embeddings, params)
    jax.block_until_ready((logits, projected_visuals))

    assert logits.shape == (B, NUM_CLASSES)
    assert projected_visuals.shape == (B, ADAPTER_OUTPUT_DIM)
    assert bool(jnp.all(jnp.isfinite(logits)))
    print("KERNEL_OK")
</pallas_src>

<mosaic_0001>
module attributes {stable_mosaic.version = 11 : i64} {
  func.func @_forgery_kernel(%arg0: i32, %arg1: memref<8x512xf32, #tpu.memory_space<vmem>>, %arg2: memref<512x384xbf16, #tpu.memory_space<vmem>>, %arg3: memref<1x256xf32, #tpu.memory_space<vmem>>, %arg4: memref<256x128xbf16, #tpu.memory_space<vmem>>, %arg5: memref<1x128xf32, #tpu.memory_space<vmem>>, %arg6: memref<128x256xbf16, #tpu.memory_space<vmem>>, %arg7: memref<128x256xbf16, #tpu.memory_space<vmem>>, %arg8: memref<1x256xf32, #tpu.memory_space<vmem>>, %arg9: memref<1x256xf32, #tpu.memory_space<vmem>>, %arg10: memref<1x256xf32, #tpu.memory_space<vmem>>, %arg11: memref<256x64xbf16, #tpu.memory_space<vmem>>, %arg12: memref<1x64xf32, #tpu.memory_space<vmem>>, %arg13: memref<64x128xbf16, #tpu.memory_space<vmem>>, %arg14: memref<1x128xf32, #tpu.memory_space<vmem>>, %arg15: memref<8x128xf32, #tpu.memory_space<vmem>>, %arg16: memref<8x128xf32, #tpu.memory_space<vmem>>) attributes {dimension_semantics = [#tpu.dimension_semantics<parallel>], iteration_bounds = array<i64: 1>, scalar_prefetch = 0 : i64, scratch_operands = 0 : i64, tpu.core_type = #tpu.core_type<tc>, window_params = [{transform_indices = @transform_0, window_bounds = array<i64: 8, 512>}, {pipeline_mode = #tpu.pipeline_mode<synchronous>, transform_indices = @transform_1, window_bounds = array<i64: 512, 384>}, {pipeline_mode = #tpu.pipeline_mode<synchronous>, transform_indices = @transform_2, window_bounds = array<i64: 1, 256>}, {pipeline_mode = #tpu.pipeline_mode<synchronous>, transform_indices = @transform_3, window_bounds = array<i64: 256, 128>}, {pipeline_mode = #tpu.pipeline_mode<synchronous>, transform_indices = @transform_4, window_bounds = array<i64: 1, 128>}, {pipeline_mode = #tpu.pipeline_mode<synchronous>, transform_indices = @transform_5, window_bounds = array<i64: 128, 256>}, {pipeline_mode = #tpu.pipeline_mode<synchronous>, transform_indices = @transform_6, window_bounds = array<i64: 128, 256>}, {pipeline_mode = #tpu.pipeline_mode<synchronous>, transform_indices = @transform_7, window_bounds = array<i64: 1, 256>}, {pipeline_mode = #tpu.pipeline_mode<synchronous>, transform_indices = @transform_8, window_bounds = array<i64: 1, 256>}, {pipeline_mode = #tpu.pipeline_mode<synchronous>, transform_indices = @transform_9, window_bounds = array<i64: 1, 256>}, {pipeline_mode = #tpu.pipeline_mode<synchronous>, transform_indices = @transform_10, window_bounds = array<i64: 256, 64>}, {pipeline_mode = #tpu.pipeline_mode<synchronous>, transform_indices = @transform_11, window_bounds = array<i64: 1, 64>}, {pipeline_mode = #tpu.pipeline_mode<synchronous>, transform_indices = @transform_12, window_bounds = array<i64: 64, 128>}, {pipeline_mode = #tpu.pipeline_mode<synchronous>, transform_indices = @transform_13, window_bounds = array<i64: 1, 128>}, {transform_indices = @transform_14, window_bounds = array<i64: 8, 128>}, {transform_indices = @transform_15, window_bounds = array<i64: 8, 128>}]} {
    %c0 = arith.constant 0 : index
    %c0_0 = arith.constant 0 : index
    %0 = vector.load %arg1[%c0, %c0_0] : memref<8x512xf32, #tpu.memory_space<vmem>>, vector<8x512xf32>
    %1 = arith.mulf %0, %0 : vector<8x512xf32>
    %cst = arith.constant dense<0.000000e+00> : vector<8xf32>
    %2 = vector.multi_reduction <add>, %1, %cst [1] : vector<8x512xf32> to vector<8xf32>
    %3 = vector.shape_cast %2 : vector<8xf32> to vector<8x1xf32>
    %cst_1 = arith.constant 1.000000e-24 : f32
    %4 = vector.broadcast %cst_1 : f32 to vector<8x1xf32>
    %5 = arith.maximumf %3, %4 : vector<8x1xf32>
    %6 = math.rsqrt %5 : vector<8x1xf32>
    %7 = vector.broadcast %6 : vector<8x1xf32> to vector<8x512xf32>
    %8 = arith.mulf %0, %7 : vector<8x512xf32>
    %9 = arith.truncf %8 : vector<8x512xf32> to vector<8x512xbf16>
    %c0_2 = arith.constant 0 : index
    %c0_3 = arith.constant 0 : index
    %10 = vector.load %arg2[%c0_2, %c0_3] : memref<512x384xbf16, #tpu.memory_space<vmem>>, vector<512x384xbf16>
    %cst_4 = arith.constant dense<0.000000e+00> : vector<8x384xf32>
    %11 = tpu.matmul %9, %10, %cst_4 {dimension_numbers = #tpu.dot_dimension_numbers<[1], [0], [0], [1], [0, 0, 1, 1], [], []>} : vector<8x512xbf16>, vector<512x384xbf16>, vector<8x384xf32> -> vector<8x384xf32>
    %12 = vector.extract_strided_slice %11 {offsets = [0, 0], sizes = [8, 256], strides = [1, 1]} : vector<8x384xf32> to vector<8x256xf32>
    %c0_5 = arith.constant 0 : index
    %c0_6 = arith.constant 0 : index
    %13 = vector.load %arg3[%c0_5, %c0_6] : memref<1x256xf32, #tpu.memory_space<vmem>>, vector<1x256xf32>
    %14 = vector.broadcast %13 : vector<1x256xf32> to vector<8x256xf32>
    %15 = arith.addf %12, %14 : vector<8x256xf32>
    %cst_7 = arith.constant 0.000000e+00 : f32
    %16 = vector.broadcast %cst_7 : f32 to vector<8x256xf32>
    %17 = arith.maximumf %15, %16 : vector<8x256xf32>
    %18 = vector.extract_strided_slice %11 {offsets = [0, 256], sizes = [8, 128], strides = [1, 1]} : vector<8x384xf32> to vector<8x128xf32>
    %19 = tpu.iota {dimensions = array<i32: 1>} : vector<8x128xi32>
    %c6_i32 = arith.constant 6 : i32
    %20 = vector.broadcast %c6_i32 : i32 to vector<8x128xi32>
    %21 = arith.cmpi slt, %19, %20 : vector<8x128xi32>
    %cst_8 = arith.constant 0.000000e+00 : f32
    %22 = vector.broadcast %cst_8 : f32 to vector<8x128xf32>
    %23 = arith.select %21, %18, %22 : vector<8x128xi1>, vector<8x128xf32>
    %cst_9 = arith.constant dense<0.000000e+00> : vector<8xf32>
    %24 = vector.multi_reduction <add>, %23, %cst_9 [1] : vector<8x128xf32> to vector<8xf32>
    %25 = vector.shape_cast %24 : vector<8xf32> to vector<8x1xf32>
    %cst_10 = arith.constant 6.000000e+00 : f32
    %26 = vector.broadcast %cst_10 : f32 to vector<8x1xf32>
    %27 = arith.divf %25, %26 : vector<8x1xf32>
    %28 = vector.broadcast %27 : vector<8x1xf32> to vector<8x128xf32>
    %29 = arith.subf %18, %28 : vector<8x128xf32>
    %30 = arith.mulf %29, %29 : vector<8x128xf32>
    %cst_11 = arith.constant 0.000000e+00 : f32
    %31 = vector.broadcast %cst_11 : f32 to vector<8x128xf32>
    %32 = arith.select %21, %30, %31 : vector<8x128xi1>, vector<8x128xf32>
    %cst_12 = arith.constant dense<0.000000e+00> : vector<8xf32>
    %33 = vector.multi_reduction <add>, %32, %cst_12 [1] : vector<8x128xf32> to vector<8xf32>
    %34 = vector.shape_cast %33 : vector<8xf32> to vector<8x1xf32>
    %cst_13 = arith.constant 5.000000e+00 : f32
    %35 = vector.broadcast %cst_13 : f32 to vector<8x1xf32>
    %36 = arith.divf %34, %35 : vector<8x1xf32>
    %37 = math.sqrt %36 : vector<8x1xf32>
    %cst_14 = arith.constant 0xFF800000 : f32
    %38 = vector.broadcast %cst_14 : f32 to vector<8x128xf32>
    %39 = arith.select %21, %18, %38 : vector<8x128xi1>, vector<8x128xf32>
    %cst_15 = arith.constant dense<0xFF800000> : vector<8xf32>
    %40 = vector.multi_reduction <maximumf>, %39, %cst_15 [1] : vector<8x128xf32> to vector<8xf32>
    %41 = vector.shape_cast %40 : vector<8xf32> to vector<8x1xf32>
    %42 = arith.truncf %17 : vector<8x256xf32> to vector<8x256xbf16>
    %c0_16 = arith.constant 0 : index
    %c0_17 = arith.constant 0 : index
    %43 = vector.load %arg4[%c0_16, %c0_17] : memref<256x128xbf16, #tpu.memory_space<vmem>>, vector<256x128xbf16>
    %cst_18 = arith.constant dense<0.000000e+00> : vector<8x128xf32>
    %44 = tpu.matmul %42, %43, %cst_18 {dimension_numbers = #tpu.dot_dimension_numbers<[1], [0], [0], [1], [0, 0, 1, 1], [], []>} : vector<8x256xbf16>, vector<256x128xbf16>, vector<8x128xf32> -> vector<8x128xf32>
    %c0_19 = arith.constant 0 : index
    %c0_20 = arith.constant 0 : index
    %45 = vector.load %arg5[%c0_19, %c0_20] : memref<1x128xf32, #tpu.memory_space<vmem>>, vector<1x128xf32>
    %46 = vector.broadcast %45 : vector<1x128xf32> to vector<8x128xf32>
    %47 = arith.addf %44, %46 : vector<8x128xf32>
    %cst_21 = arith.constant 0.000000e+00 : f32
    %48 = vector.broadcast %cst_21 : f32 to vector<8x128xf32>
    %49 = arith.maximumf %47, %48 : vector<8x128xf32>
    %c0_22 = arith.constant 0 : index
    %c0_23 = arith.constant 0 : index
    %50 = vector.load %arg16[%c0_22, %c0_23] : memref<8x128xf32, #tpu.memory_space<vmem>>, vector<8x128xf32>
    tpu.vector_store %arg16[%c0_22, %c0_23], %49 {strides = array<i32>} : memref<8x128xf32, #tpu.memory_space<vmem>>, vector<8x128xf32>,
    %51 = arith.truncf %49 : vector<8x128xf32> to vector<8x128xbf16>
    %c0_24 = arith.constant 0 : index
    %c0_25 = arith.constant 0 : index
    %52 = vector.load %arg6[%c0_24, %c0_25] : memref<128x256xbf16, #tpu.memory_space<vmem>>, vector<128x256xbf16>
    %cst_26 = arith.constant dense<0.000000e+00> : vector<8x256xf32>
    %53 = tpu.matmul %51, %52, %cst_26 {dimension_numbers = #tpu.dot_dimension_numbers<[1], [0], [0], [1], [0, 0, 1, 1], [], []>} : vector<8x128xbf16>, vector<128x256xbf16>, vector<8x256xf32> -> vector<8x256xf32>
    %54 = arith.truncf %18 : vector<8x128xf32> to vector<8x128xbf16>
    %c0_27 = arith.constant 0 : index
    %c0_28 = arith.constant 0 : index
    %55 = vector.load %arg7[%c0_27, %c0_28] : memref<128x256xbf16, #tpu.memory_space<vmem>>, vector<128x256xbf16>
    %cst_29 = arith.constant dense<0.000000e+00> : vector<8x256xf32>
    %56 = tpu.matmul %54, %55, %cst_29 {dimension_numbers = #tpu.dot_dimension_numbers<[1], [0], [0], [1], [0, 0, 1, 1], [], []>} : vector<8x128xbf16>, vector<128x256xbf16>, vector<8x256xf32> -> vector<8x256xf32>
    %57 = arith.addf %53, %56 : vector<8x256xf32>
    %c0_30 = arith.constant 0 : index
    %c0_31 = arith.constant 0 : index
    %58 = vector.load %arg10[%c0_30, %c0_31] : memref<1x256xf32, #tpu.memory_space<vmem>>, vector<1x256xf32>
    %59 = vector.broadcast %58 : vector<1x256xf32> to vector<8x256xf32>
    %60 = arith.addf %57, %59 : vector<8x256xf32>
    %c0_32 = arith.constant 0 : index
    %c0_33 = arith.constant 0 : index
    %61 = vector.load %arg8[%c0_32, %c0_33] : memref<1x256xf32, #tpu.memory_space<vmem>>, vector<1x256xf32>
    %62 = vector.broadcast %37 : vector<8x1xf32> to vector<8x256xf32>
    %63 = vector.broadcast %61 : vector<1x256xf32> to vector<8x256xf32>
    %64 = arith.mulf %62, %63 : vector<8x256xf32>
    %65 = arith.addf %60, %64 : vector<8x256xf32>
    %c0_34 = arith.constant 0 : index
    %c0_35 = arith.constant 0 : index
    %66 = vector.load %arg9[%c0_34, %c0_35] : memref<1x256xf32, #tpu.memory_space<vmem>>, vector<1x256xf32>
    %67 = vector.broadcast %41 : vector<8x1xf32> to vector<8x256xf32>
    %68 = vector.broadcast %66 : vector<1x256xf32> to vector<8x256xf32>
    %69 = arith.mulf %67, %68 : vector<8x256xf32>
    %70 = arith.addf %65, %69 : vector<8x256xf32>
    %cst_36 = arith.constant 0.000000e+00 : f32
    %71 = vector.broadcast %cst_36 : f32 to vector<8x256xf32>
    %72 = arith.maximumf %70, %71 : vector<8x256xf32>
    %73 = arith.truncf %72 : vector<8x256xf32> to vector<8x256xbf16>
    %c0_37 = arith.constant 0 : index
    %c0_38 = arith.constant 0 : index
    %74 = vector.load %arg11[%c0_37, %c0_38] : memref<256x64xbf16, #tpu.memory_space<vmem>>, vector<256x64xbf16>
    %cst_39 = arith.constant dense<0.000000e+00> : vector<8x64xf32>
    %75 = tpu.matmul %73, %74, %cst_39 {dimension_numbers = #tpu.dot_dimension_numbers<[1], [0], [0], [1], [0, 0, 1, 1], [], []>} : vector<8x256xbf16>, vector<256x64xbf16>, vector<8x64xf32> -> vector<8x64xf32>
    %c0_40 = arith.constant 0 : index
    %c0_41 = arith.constant 0 : index
    %76 = vector.load %arg12[%c0_40, %c0_41] : memref<1x64xf32, #tpu.memory_space<vmem>>, vector<1x64xf32>
    %77 = vector.broadcast %76 : vector<1x64xf32> to vector<8x64xf32>
    %78 = arith.addf %75, %77 : vector<8x64xf32>
    %cst_42 = arith.constant 0.000000e+00 : f32
    %79 = vector.broadcast %cst_42 : f32 to vector<8x64xf32>
    %80 = arith.maximumf %78, %79 : vector<8x64xf32>
    %81 = arith.truncf %80 : vector<8x64xf32> to vector<8x64xbf16>
    %c0_43 = arith.constant 0 : index
    %c0_44 = arith.constant 0 : index
    %82 = vector.load %arg13[%c0_43, %c0_44] : memref<64x128xbf16, #tpu.memory_space<vmem>>, vector<64x128xbf16>
    %cst_45 = arith.constant dense<0.000000e+00> : vector<8x128xf32>
    %83 = tpu.matmul %81, %82, %cst_45 {dimension_numbers = #tpu.dot_dimension_numbers<[1], [0], [0], [1], [0, 0, 1, 1], [], []>} : vector<8x64xbf16>, vector<64x128xbf16>, vector<8x128xf32> -> vector<8x128xf32>
    %c0_46 = arith.constant 0 : index
    %c0_47 = arith.constant 0 : index
    %84 = vector.load %arg14[%c0_46, %c0_47] : memref<1x128xf32, #tpu.memory_space<vmem>>, vector<1x128xf32>
    %85 = vector.broadcast %84 : vector<1x128xf32> to vector<8x128xf32>
    %86 = arith.addf %83, %85 : vector<8x128xf32>
    %c0_48 = arith.constant 0 : index
    %c0_49 = arith.constant 0 : index
    %87 = vector.load %arg15[%c0_48, %c0_49] : memref<8x128xf32, #tpu.memory_space<vmem>>, vector<8x128xf32>
    tpu.vector_store %arg15[%c0_48, %c0_49], %86 {strides = array<i32>} : memref<8x128xf32, #tpu.memory_space<vmem>>, vector<8x128xf32>,
    return
  }
  func.func @transform_0(%arg0: i32) -> (i32, i32) {
    %c0_i32 = arith.constant 0 : i32
    %c0_i32_0 = arith.constant 0 : i32
    return %arg0, %c0_i32 : i32, i32
  }
  func.func @transform_1(%arg0: i32) -> (i32, i32) {
    %c0_i32 = arith.constant 0 : i32
    %c0_i32_0 = arith.constant 0 : i32
    %c0_i32_1 = arith.constant 0 : i32
    return %c0_i32, %c0_i32_0 : i32, i32
  }
  func.func @transform_2(%arg0: i32) -> (i32, i32) {
    %c0_i32 = arith.constant 0 : i32
    %c0_i32_0 = arith.constant 0 : i32
    %c0_i32_1 = arith.constant 0 : i32
    return %c0_i32, %c0_i32_0 : i32, i32
  }
  func.func @transform_3(%arg0: i32) -> (i32, i32) {
    %c0_i32 = arith.constant 0 : i32
    %c0_i32_0 = arith.constant 0 : i32
    %c0_i32_1 = arith.constant 0 : i32
    return %c0_i32, %c0_i32_0 : i32, i32
  }
  func.func @transform_4(%arg0: i32) -> (i32, i32) {
    %c0_i32 = arith.constant 0 : i32
    %c0_i32_0 = arith.constant 0 : i32
    %c0_i32_1 = arith.constant 0 : i32
    return %c0_i32, %c0_i32_0 : i32, i32
  }
  func.func @transform_5(%arg0: i32) -> (i32, i32) {
    %c0_i32 = arith.constant 0 : i32
    %c0_i32_0 = arith.constant 0 : i32
    %c0_i32_1 = arith.constant 0 : i32
    return %c0_i32, %c0_i32_0 : i32, i32
  }
  func.func @transform_6(%arg0: i32) -> (i32, i32) {
    %c0_i32 = arith.constant 0 : i32
    %c0_i32_0 = arith.constant 0 : i32
    %c0_i32_1 = arith.constant 0 : i32
    return %c0_i32, %c0_i32_0 : i32, i32
  }
  func.func @transform_7(%arg0: i32) -> (i32, i32) {
    %c0_i32 = arith.constant 0 : i32
    %c0_i32_0 = arith.constant 0 : i32
    %c0_i32_1 = arith.constant 0 : i32
    return %c0_i32, %c0_i32_0 : i32, i32
  }
  func.func @transform_8(%arg0: i32) -> (i32, i32) {
    %c0_i32 = arith.constant 0 : i32
    %c0_i32_0 = arith.constant 0 : i32
    %c0_i32_1 = arith.constant 0 : i32
    return %c0_i32, %c0_i32_0 : i32, i32
  }
  func.func @transform_9(%arg0: i32) -> (i32, i32) {
    %c0_i32 = arith.constant 0 : i32
    %c0_i32_0 = arith.constant 0 : i32
    %c0_i32_1 = arith.constant 0 : i32
    return %c0_i32, %c0_i32_0 : i32, i32
  }
  func.func @transform_10(%arg0: i32) -> (i32, i32) {
    %c0_i32 = arith.constant 0 : i32
    %c0_i32_0 = arith.constant 0 : i32
    %c0_i32_1 = arith.constant 0 : i32
    return %c0_i32, %c0_i32_0 : i32, i32
  }
  func.func @transform_11(%arg0: i32) -> (i32, i32) {
    %c0_i32 = arith.constant 0 : i32
    %c0_i32_0 = arith.constant 0 : i32
    %c0_i32_1 = arith.constant 0 : i32
    return %c0_i32, %c0_i32_0 : i32, i32
  }
  func.func @transform_12(%arg0: i32) -> (i32, i32) {
    %c0_i32 = arith.constant 0 : i32
    %c0_i32_0 = arith.constant 0 : i32
    %c0_i32_1 = arith.constant 0 : i32
    return %c0_i32, %c0_i32_0 : i32, i32
  }
  func.func @transform_13(%arg0: i32) -> (i32, i32) {
    %c0_i32 = arith.constant 0 : i32
    %c0_i32_0 = arith.constant 0 : i32
    %c0_i32_1 = arith.constant 0 : i32
    return %c0_i32, %c0_i32_0 : i32, i32
  }
  func.func @transform_14(%arg0: i32) -> (i32, i32) {
    %c0_i32 = arith.constant 0 : i32
    %c0_i32_0 = arith.constant 0 : i32
    return %arg0, %c0_i32 : i32, i32
  }
  func.func @transform_15(%arg0: i32) -> (i32, i32) {
    %c0_i32 = arith.constant 0 : i32
    %c0_i32_0 = arith.constant 0 : i32
    return %arg0, %c0_i32 : i32, i32
  }
}

</mosaic_0001>

<llo_original>
// kernel: forgery_detector_forward.1
$region0: #{forgery_detector_forward.1}
  #allocation0 [shape = 'u32[]', space=smem, size = 0x4, offset = 0x4, fixed_abs, tag = 'smem constant byte address 0x4 - core index']
  #allocation1 [shape = 'u32[144,128]{1,0:T(1,128)}', space=vmem, size = 0x12000, scoped, tag = 'internal scratch']
  %s0 = inlined_call_operand.vmem [shape: f32[8,512], index: 0, kind: input, shape index: {}]
  %s1 = inlined_call_operand.vmem [shape: bf16[512,384], index: 1, kind: input, shape index: {}]
  %s2 = inlined_call_operand.vmem [shape: f32[1,256], index: 2, kind: input, shape index: {}]
  %s3 = inlined_call_operand.vmem [shape: bf16[256,128], index: 3, kind: input, shape index: {}]
  %s4 = inlined_call_operand.vmem [shape: f32[1,128], index: 4, kind: input, shape index: {}]
  %s5 = inlined_call_operand.vmem [shape: bf16[128,256], index: 5, kind: input, shape index: {}]
  %s6 = inlined_call_operand.vmem [shape: bf16[128,256], index: 6, kind: input, shape index: {}]
  %s7 = inlined_call_operand.vmem [shape: f32[1,256], index: 7, kind: input, shape index: {}]
  %s8 = inlined_call_operand.vmem [shape: f32[1,256], index: 8, kind: input, shape index: {}]
  %s9 = inlined_call_operand.vmem [shape: f32[1,256], index: 9, kind: input, shape index: {}]
  %s10 = inlined_call_operand.vmem [shape: bf16[256,64], index: 10, kind: input, shape index: {}]
  %s11 = inlined_call_operand.vmem [shape: f32[1,64], index: 11, kind: input, shape index: {}]
  %s12 = inlined_call_operand.vmem [shape: bf16[64,128], index: 12, kind: input, shape index: {}]
  %s13 = inlined_call_operand.vmem [shape: f32[1,128], index: 13, kind: input, shape index: {}]
  %s14 = inlined_call_operand.vmem [shape: f32[8,128], index: 14, kind: output, shape index: {0}]
  %s15 = inlined_call_operand.vmem [shape: f32[8,128], index: 15, kind: output, shape index: {1}]
  %16 = xla_tuple %s14, %s15
  %s17 = sld [smem:[#allocation0]]
  $region74: #{forgery_detector_forward.1} parent=0
    _
  %s19 = ssub.s32 1, %s17
  %s20 = scalar_select 0, %s19, %s17
  // Predicated region
  $region2: #{forgery_detector_forward.1} parent=0 // pred_check
    _
  $region3: #{forgery_detector_forward.1} parent=0 // pred_check_branch
    %22 = sbr.rel (0) target = $region5
  $region4: #{forgery_detector_forward.1} parent=0 // pred_region
    _
  $region5: #{forgery_detector_forward.1} parent=0 // pred_fallthru
    _
  // Predicated region
  $region6: #{forgery_detector_forward.1} parent=0 // pred_check
    _
  $region7: #{forgery_detector_forward.1} parent=0 // pred_check_branch
    %24 = sbr.rel (0) target = $region9
  $region8: #{forgery_detector_forward.1} parent=0 // pred_region
    _
  $region9: #{forgery_detector_forward.1} parent=0 // pred_fallthru
    _
  // Predicated region
  $region10: #{forgery_detector_forward.1} parent=0 // pred_check
    _
  $region11: #{forgery_detector_forward.1} parent=0 // pred_check_branch
    %26 = sbr.rel (0) target = $region13
  $region12: #{forgery_detector_forward.1} parent=0 // pred_region
    _
  $region13: #{forgery_detector_forward.1} parent=0 // pred_fallthru
    _
  // Predicated region
  $region14: #{forgery_detector_forward.1} parent=0 // pred_check
    _
  $region15: #{forgery_detector_forward.1} parent=0 // pred_check_branch
    %28 = sbr.rel (0) target = $region17
  $region16: #{forgery_detector_forward.1} parent=0 // pred_region
    _
  $region17: #{forgery_detector_forward.1} parent=0 // pred_fallthru
    _
  // Predicated region
  $region18: #{forgery_detector_forward.1} parent=0 // pred_check
    _
  $region19: #{forgery_detector_forward.1} parent=0 // pred_check_branch
    %30 = sbr.rel (0) target = $region21
  $region20: #{forgery_detector_forward.1} parent=0 // pred_region
    _
  $region21: #{forgery_detector_forward.1} parent=0 // pred_fallthru
    _
  // Predicated region
  $region22: #{forgery_detector_forward.1} parent=0 // pred_check
    _
  $region23: #{forgery_detector_forward.1} parent=0 // pred_check_branch
    %32 = sbr.rel (0) target = $region25
  $region24: #{forgery_detector_forward.1} parent=0 // pred_region
    _
  $region25: #{forgery_detector_forward.1} parent=0 // pred_fallthru
    _
  // Predicated region
  $region26: #{forgery_detector_forward.1} parent=0 // pred_check
    _
  $region27: #{forgery_detector_forward.1} parent=0 // pred_check_branch
    %34 = sbr.rel (0) target = $region29
  $region28: #{forgery_detector_forward.1} parent=0 // pred_region
    _
  $region29: #{forgery_detector_forward.1} parent=0 // pred_fallthru
    _
  // Predicated region
  $region30: #{forgery_detector_forward.1} parent=0 // pred_check
    _
  $region31: #{forgery_detector_forward.1} parent=0 // pred_check_branch
    %36 = sbr.rel (0) target = $region33
  $region32: #{forgery_detector_forward.1} parent=0 // pred_region
    _
  $region33: #{forgery_detector_forward.1} parent=0 // pred_fallthru
    _
  // Predicated region
  $region34: #{forgery_detector_forward.1} parent=0 // pred_check
    _
  $region35: #{forgery_detector_forward.1} parent=0 // pred_check_branch
    %38 = sbr.rel (0) target = $region37
  $region36: #{forgery_detector_forward.1} parent=0 // pred_region
    _
  $region37: #{forgery_detector_forward.1} parent=0 // pred_fallthru
    _
  // Predicated region
  $region38: #{forgery_detector_forward.1} parent=0 // pred_check
    _
  $region39: #{forgery_detector_forward.1} parent=0 // pred_check_branch
    %40 = sbr.rel (0) target = $region41
  $region40: #{forgery_detector_forward.1} parent=0 // pred_region
    _
  $region41: #{forgery_detector_forward.1} parent=0 // pred_fallthru
    _
  // Predicated region
  $region42: #{forgery_detector_forward.1} parent=0 // pred_check
    _
  $region43: #{forgery_detector_forward.1} parent=0 // pred_check_branch
    %42 = sbr.rel (0) target = $region45
  $region44: #{forgery_detector_forward.1} parent=0 // pred_region
    _
  $region45: #{forgery_detector_forward.1} parent=0 // pred_fallthru
    _
  // Predicated region
  $region46: #{forgery_detector_forward.1} parent=0 // pred_check
    _
  $region47: #{forgery_detector_forward.1} parent=0 // pred_check_branch
    %44 = sbr.rel (0) target = $region49
  $region48: #{forgery_detector_forward.1} parent=0 // pred_region
    _
  $region49: #{forgery_detector_forward.1} parent=0 // pred_fallthru
    _
  // Predicated region
  $region50: #{forgery_detector_forward.1} parent=0 // pred_check
    _
  $region51: #{forgery_detector_forward.1} parent=0 // pred_check_branch
    %46 = sbr.rel (0) target = $region53
  $region52: #{forgery_detector_forward.1} parent=0 // pred_region
    _
  $region53: #{forgery_detector_forward.1} parent=0 // pred_fallthru
    _
  // Predicated region
  $region54: #{forgery_detector_forward.1} parent=0 // pred_check
    _
  $region55: #{forgery_detector_forward.1} parent=0 // pred_check_branch
    %48 = sbr.rel (0) target = $region57
  $region56: #{forgery_detector_forward.1} parent=0 // pred_region
    _
  $region57: #{forgery_detector_forward.1} parent=0 // pred_fallthru
    _
  %v50 = vld [vmem:[%s0] sm:$0xff]
  %v51 = vld [vmem:[%s0 + $0x8] sm:$0xff]
  %v52 = vld [vmem:[%s0 + $0x10] sm:$0xff]
  %v53 = vld [vmem:[%s0 + $0x18] sm:$0xff]
  %v54 = vmul.f32 %v50, %v50
  %v55 = vmul.f32 %v51, %v51
  %v56 = vmul.f32 %v52, %v52
  %v57 = vmul.f32 %v53, %v53
  %v58 = vadd.f32 %v54, %v55
  %v59 = vadd.f32 %v58, %v56
  %v60 = vadd.f32 %v59, %v57
  %61 = vadd.xlane.f32.xlu0 %v60
  %v62 = vpop.xlane.xlu0 %61
  %v63 = vmax.f32 %v62, 1e-24
  %v64 = vrsqrt.pop %v63
  %v65 = vmul.f32 %v50, %v64
  %v66 = vmul.f32 %v51, %v64
  %v67 = vmul.f32 %v52, %v64
  %v68 = vmul.f32 %v53, %v64
  %v69 = vpack.c.bf16 %v65, %v65
  %v70 = vpack.c.bf16 %v66, %v66
  %v71 = vpack.c.bf16 %v67, %v67
  %v72 = vpack.c.bf16 %v68, %v68
  %v73 = vld [vmem:[%s1] sm:$0xff]
  %v74 = vld [vmem:[%s1 + $0x8] sm:$0xf]
  %v75 = vld [vmem:[%s1 + $0xc] sm:$0xff]
  %v76 = vld [vmem:[%s1 + $0x14] sm:$0xf]
  %v77 = vld [vmem:[%s1 + $0x18] sm:$0xff]
  %v78 = vld [vmem:[%s1 + $0x20] sm:$0xf]
  %v79 = vld [vmem:[%s1 + $0x24] sm:$0xff]
  %v80 = vld [vmem:[%s1 + $0x2c] sm:$0xf]
  %v81 = vld [vmem:[%s1 + $0x30] sm:$0xff]
  %v82 = vld [vmem:[%s1 + $0x38] sm:$0xf]
  %v83 = vld [vmem:[%s1 + $0x3c] sm:$0xff]
  %v84 = vld [vmem:[%s1 + $0x44] sm:$0xf]
  %v85 = vld [vmem:[%s1 + $0x48] sm:$0xff]
  %v86 = vld [vmem:[%s1 + $0x50] sm:$0xf]
  %v87 = vld [vmem:[%s1 + $0x54] sm:$0xff]
  %v88 = vld [vmem:[%s1 + $0x5c] sm:$0xf]
  %v89 = vld [vmem:[%s1 + $0x60] sm:$0xff]
  %v90 = vld [vmem:[%s1 + $0x68] sm:$0xf]
  %v91 = vld [vmem:[%s1 + $0x6c] sm:$0xff]
  %v92 = vld [vmem:[%s1 + $0x74] sm:$0xf]
  %v93 = vld [vmem:[%s1 + $0x78] sm:$0xff]
  %v94 = vld [vmem:[%s1 + $0x80] sm:$0xf]
  %v95 = vld [vmem:[%s1 + $0x84] sm:$0xff]
  %v96 = vld [vmem:[%s1 + $0x8c] sm:$0xf]
  %v97 = vld [vmem:[%s1 + $0x90] sm:$0xff]
  %v98 = vld [vmem:[%s1 + $0x98] sm:$0xf]
  %v99 = vld [vmem:[%s1 + $0x9c] sm:$0xff]
  %v100 = vld [vmem:[%s1 + $0xa4] sm:$0xf]
  %v101 = vld [vmem:[%s1 + $0xa8] sm:$0xff]
  %v102 = vld [vmem:[%s1 + $0xb0] sm:$0xf]
  %v103 = vld [vmem:[%s1 + $0xb4] sm:$0xff]
  %v104 = vld [vmem:[%s1 + $0xbc] sm:$0xf]
  %v105 = vld [vmem:[%s1 + $0xc0] sm:$0xff]
  %v106 = vld [vmem:[%s1 + $0xc8] sm:$0xf]
  %v107 = vld [vmem:[%s1 + $0xcc] sm:$0xff]
  %v108 = vld [vmem:[%s1 + $0xd4] sm:$0xf]
  %v109 = vld [vmem:[%s1 + $0xd8] sm:$0xff]
  %v110 = vld [vmem:[%s1 + $0xe0] sm:$0xf]
  %v111 = vld [vmem:[%s1 + $0xe4] sm:$0xff]
  %v112 = vld [vmem:[%s1 + $0xec] sm:$0xf]
  %v113 = vld [vmem:[%s1 + $0xf0] sm:$0xff]
  %v114 = vld [vmem:[%s1 + $0xf8] sm:$0xf]
  %v115 = vld [vmem:[%s1 + $0xfc] sm:$0xff]
  %v116 = vld [vmem:[%s1 + $0x104] sm:$0xf]
  %v117 = vld [vmem:[%s1 + $0x108] sm:$0xff]
  %v118 = vld [vmem:[%s1 + $0x110] sm:$0xf]
  %v119 = vld [vmem:[%s1 + $0x114] sm:$0xff]
  %v120 = vld [vmem:[%s1 + $0x11c] sm:$0xf]
  %v121 = vld [vmem:[%s1 + $0x120] sm:$0xff]
  %v122 = vld [vmem:[%s1 + $0x128] sm:$0xf]
  %v123 = vld [vmem:[%s1 + $0x12c] sm:$0xff]
  %v124 = vld [vmem:[%s1 + $0x134] sm:$0xf]
  %v125 = vld [vmem:[%s1 + $0x138] sm:$0xff]
  %v126 = vld [vmem:[%s1 + $0x140] sm:$0xf]
  %v127 = vld [vmem:[%s1 + $0x144] sm:$0xff]
  %v128 = vld [vmem:[%s1 + $0x14c] sm:$0xf]
  %v129 = vld [vmem:[%s1 + $0x150] sm:$0xff]
  %v130 = vld [vmem:[%s1 + $0x158] sm:$0xf]
  %v131 = vld [vmem:[%s1 + $0x15c] sm:$0xff]
  %v132 = vld [vmem:[%s1 + $0x164] sm:$0xf]
  %v133 = vld [vmem:[%s1 + $0x168] sm:$0xff]
  %v134 = vld [vmem:[%s1 + $0x170] sm:$0xf]
  %v135 = vld [vmem:[%s1 + $0x174] sm:$0xff]
  %v136 = vld [vmem:[%s1 + $0x17c] sm:$0xf]
  %v137 = vld [vmem:[%s1 + $0x180] sm:$0xff]
  %v138 = vld [vmem:[%s1 + $0x188] sm:$0xf]
  %v139 = vld [vmem:[%s1 + $0x18c] sm:$0xff]
  %v140 = vld [vmem:[%s1 + $0x194] sm:$0xf]
  %v141 = vld [vmem:[%s1 + $0x198] sm:$0xff]
  %v142 = vld [vmem:[%s1 + $0x1a0] sm:$0xf]
  %v143 = vld [vmem:[%s1 + $0x1a4] sm:$0xff]
  %v144 = vld [vmem:[%s1 + $0x1ac] sm:$0xf]
  %v145 = vld [vmem:[%s1 + $0x1b0] sm:$0xff]
  %v146 = vld [vmem:[%s1 + $0x1b8] sm:$0xf]
  %v147 = vld [vmem:[%s1 + $0x1bc] sm:$0xff]
  %v148 = vld [vmem:[%s1 + $0x1c4] sm:$0xf]
  %v149 = vld [vmem:[%s1 + $0x1c8] sm:$0xff]
  %v150 = vld [vmem:[%s1 + $0x1d0] sm:$0xf]
  %v151 = vld [vmem:[%s1 + $0x1d4] sm:$0xff]
  %v152 = vld [vmem:[%s1 + $0x1dc] sm:$0xf]
  %v153 = vld [vmem:[%s1 + $0x1e0] sm:$0xff]
  %v154 = vld [vmem:[%s1 + $0x1e8] sm:$0xf]
  %v155 = vld [vmem:[%s1 + $0x1ec] sm:$0xff]
  %v156 = vld [vmem:[%s1 + $0x1f4] sm:$0xf]
  %v157 = vld [vmem:[%s1 + $0x1f8] sm:$0xff]
  %v158 = vld [vmem:[%s1 + $0x200] sm:$0xf]
  %v159 = vld [vmem:[%s1 + $0x204] sm:$0xff]
  %v160 = vld [vmem:[%s1 + $0x20c] sm:$0xf]
  %v161 = vld [vmem:[%s1 + $0x210] sm:$0xff]
  %v162 = vld [vmem:[%s1 + $0x218] sm:$0xf]
  %v163 = vld [vmem:[%s1 + $0x21c] sm:$0xff]
  %v164 = vld [vmem:[%s1 + $0x224] sm:$0xf]
  %v165 = vld [vmem:[%s1 + $0x228] sm:$0xff]
  %v166 = vld [vmem:[%s1 + $0x230] sm:$0xf]
  %v167 = vld [vmem:[%s1 + $0x234] sm:$0xff]
  %v168 = vld [vmem:[%s1 + $0x23c] sm:$0xf]
  %v169 = vld [vmem:[%s1 + $0x240] sm:$0xff]
  %v170 = vld [vmem:[%s1 + $0x248] sm:$0xf]
  %v171 = vld [vmem:[%s1 + $0x24c] sm:$0xff]
  %v172 = vld [vmem:[%s1 + $0x254] sm:$0xf]
  %v173 = vld [vmem:[%s1 + $0x258] sm:$0xff]
  %v174 = vld [vmem:[%s1 + $0x260] sm:$0xf]
  %v175 = vld [vmem:[%s1 + $0x264] sm:$0xff]
  %v176 = vld [vmem:[%s1 + $0x26c] sm:$0xf]
  %v177 = vld [vmem:[%s1 + $0x270] sm:$0xff]
  %v178 = vld [vmem:[%s1 + $0x278] sm:$0xf]
  %v179 = vld [vmem:[%s1 + $0x27c] sm:$0xff]
  %v180 = vld [vmem:[%s1 + $0x284] sm:$0xf]
  %v181 = vld [vmem:[%s1 + $0x288] sm:$0xff]
  %v182 = vld [vmem:[%s1 + $0x290] sm:$0xf]
  %v183 = vld [vmem:[%s1 + $0x294] sm:$0xff]
  %v184 = vld [vmem:[%s1 + $0x29c] sm:$0xf]
  %v185 = vld [vmem:[%s1 + $0x2a0] sm:$0xff]
  %v186 = vld [vmem:[%s1 + $0x2a8] sm:$0xf]
  %v187 = vld [vmem:[%s1 + $0x2ac] sm:$0xff]
  %v188 = vld [vmem:[%s1 + $0x2b4] sm:$0xf]
  %v189 = vld [vmem:[%s1 + $0x2b8] sm:$0xff]
  %v190 = vld [vmem:[%s1 + $0x2c0] sm:$0xf]
  %v191 = vld [vmem:[%s1 + $0x2c4] sm:$0xff]
  %v192 = vld [vmem:[%s1 + $0x2cc] sm:$0xf]
  %v193 = vld [vmem:[%s1 + $0x2d0] sm:$0xff]
  %v194 = vld [vmem:[%s1 + $0x2d8] sm:$0xf]
  %v195 = vld [vmem:[%s1 + $0x2dc] sm:$0xff]
  %v196 = vld [vmem:[%s1 + $0x2e4] sm:$0xf]
  %v197 = vld [vmem:[%s1 + $0x2e8] sm:$0xff]
  %v198 = vld [vmem:[%s1 + $0x2f0] sm:$0xf]
  %v199 = vld [vmem:[%s1 + $0x2f4] sm:$0xff]
  %v200 = vld [vmem:[%s1 + $0x2fc] sm:$0xf]
  %v329 = vunpack.c.l.b16 %v73
  %v330 = vunpack.c.h.b16 %v73
  %v331 = vunpack.c.l.b16 %v74
  %v332 = vunpack.c.l.b16 %v75
  %v333 = vunpack.c.h.b16 %v75
  %v334 = vunpack.c.l.b16 %v76
  %v335 = vunpack.c.l.b16 %v77
  %v336 = vunpack.c.h.b16 %v77
  %v337 = vunpack.c.l.b16 %v78
  %v338 = vunpack.c.l.b16 %v79
  %v339 = vunpack.c.h.b16 %v79
  %v340 = vunpack.c.l.b16 %v80
  %v341 = vunpack.c.l.b16 %v81
  %v342 = vunpack.c.h.b16 %v81
  %v343 = vunpack.c.l.b16 %v82
  %v344 = vunpack.c.l.b16 %v83
  %v345 = vunpack.c.h.b16 %v83
  %v346 = vunpack.c.l.b16 %v84
  %v347 = vunpack.c.l.b16 %v85
  %v348 = vunpack.c.h.b16 %v85
  %v349 = vunpack.c.l.b16 %v86
  %v350 = vunpack.c.l.b16 %v87
  %v351 = vunpack.c.h.b16 %v87
  %v352 = vunpack.c.l.b16 %v88
  %v353 = vunpack.c.l.b16 %v89
  %v354 = vunpack.c.h.b16 %v89
  %v355 = vunpack.c.l.b16 %v90
  %v356 = vunpack.c.l.b16 %v91
  %v357 = vunpack.c.h.b16 %v91
  %v358 = vunpack.c.l.b16 %v92
  %v359 = vunpack.c.l.b16 %v93
  %v360 = vunpack.c.h.b16 %v93
  %v361 = vunpack.c.l.b16 %v94
  %v362 = vunpack.c.l.b16 %v95
  %v363 = vunpack.c.h.b16 %v95
  %v364 = vunpack.c.l.b16 %v96
  %v365 = vunpack.c.l.b16 %v97
  %v366 = vunpack.c.h.b16 %v97
  %v367 = vunpack.c.l.b16 %v98
  %v368 = vunpack.c.l.b16 %v99
  %v369 = vunpack.c.h.b16 %v99
  %v370 = vunpack.c.l.b16 %v100
  %v371 = vunpack.c.l.b16 %v101
  %v372 = vunpack.c.h.b16 %v101
  %v373 = vunpack.c.l.b16 %v102
  %v374 = vunpack.c.l.b16 %v103
  %v375 = vunpack.c.h.b16 %v103
  %v376 = vunpack.c.l.b16 %v104
  %v377 = vunpack.c.l.b16 %v105
  %v378 = vunpack.c.h.b16 %v105
  %v379 = vunpack.c.l.b16 %v106
  %v380 = vunpack.c.l.b16 %v107
  %v381 = vunpack.c.h.b16 %v107
  %v382 = vunpack.c.l.b16 %v108
  %v383 = vunpack.c.l.b16 %v109
  %v384 = vunpack.c.h.b16 %v109
  %v385 = vunpack.c.l.b16 %v110
  %v386 = vunpack.c.l.b16 %v111
  %v387 = vunpack.c.h.b16 %v111
  %v388 = vunpack.c.l.b16 %v112
  %v389 = vunpack.c.l.b16 %v113
  %v390 = vunpack.c.h.b16 %v113
  %v391 = vunpack.c.l.b16 %v114
  %v392 = vunpack.c.l.b16 %v115
  %v393 = vunpack.c.h.b16 %v115
  %v394 = vunpack.c.l.b16 %v116
  %v395 = vunpack.c.l.b16 %v117
  %v396 = vunpack.c.h.b16 %v117
  %v397 = vunpack.c.l.b16 %v118
  %v398 = vunpack.c.l.b16 %v119
  %v399 = vunpack.c.h.b16 %v119
  %v400 = vunpack.c.l.b16 %v120
  %v401 = vunpack.c.l.b16 %v121
  %v402 = vunpack.c.h.b16 %v121
  %v403 = vunpack.c.l.b16 %v122
  %v404 = vunpack.c.l.b16 %v123
  %v405 = vunpack.c.h.b16 %v123
  %v406 = vunpack.c.l.b16 %v124
  %v407 = vunpack.c.l.b16 %v125
  %v408 = vunpack.c.h.b16 %v125
  %v409 = vunpack.c.l.b16 %v126
  %v410 = vunpack.c.l.b16 %v127
  %v411 = vunpack.c.h.b16 %v127
  %v412 = vunpack.c.l.b16 %v128
  %v413 = vunpack.c.l.b16 %v129
  %v414 = vunpack.c.h.b16 %v129
  %v415 = vunpack.c.l.b16 %v130
  %v416 = vunpack.c.l.b16 %v131
  %v417 = vunpack.c.h.b16 %v131
  %v418 = vunpack.c.l.b16 %v132
  %v419 = vunpack.c.l.b16 %v133
  %v420 = vunpack.c.h.b16 %v133
  %v421 = vunpack.c.l.b16 %v134
  %v422 = vunpack.c.l.b16 %v135
  %v423 = vunpack.c.h.b16 %v135
  %v424 = vunpack.c.l.b16 %v136
  %v425 = vunpack.c.l.b16 %v137
  %v426 = vunpack.c.h.b16 %v137
  %v427 = vunpack.c.l.b16 %v138
  %v428 = vunpack.c.l.b16 %v139
  %v429 = vunpack.c.h.b16 %v139
  %v430 = vunpack.c.l.b16 %v140
  %v431 = vunpack.c.l.b16 %v141
  %v432 = vunpack.c.h.b16 %v141
  %v433 = vunpack.c.l.b16 %v142
  %v434 = vunpack.c.l.b16 %v143
  %v435 = vunpack.c.h.b16 %v143
  %v436 = vunpack.c.l.b16 %v144
  %v437 = vunpack.c.l.b16 %v145
  %v438 = vunpack.c.h.b16 %v145
  %v439 = vunpack.c.l.b16 %v146
  %v440 = vunpack.c.l.b16 %v147
  %v441 = vunpack.c.h.b16 %v147
  %v442 = vunpack.c.l.b16 %v148
  %v443 = vunpack.c.l.b16 %v149
  %v444 = vunpack.c.h.b16 %v149
  %v445 = vunpack.c.l.b16 %v150
  %v446 = vunpack.c.l.b16 %v151
  %v447 = vunpack.c.h.b16 %v151
  %v448 = vunpack.c.l.b16 %v152
  %v449 = vunpack.c.l.b16 %v153
  %v450 = vunpack.c.h.b16 %v153
  %v451 = vunpack.c.l.b16 %v154
  %v452 = vunpack.c.l.b16 %v155
  %v453 = vunpack.c.h.b16 %v155
  %v454 = vunpack.c.l.b16 %v156
  %v455 = vunpack.c.l.b16 %v157
  %v456 = vunpack.c.h.b16 %v157
  %v457 = vunpack.c.l.b16 %v158
  %v458 = vunpack.c.l.b16 %v159
  %v459 = vunpack.c.h.b16 %v159
  %v460 = vunpack.c.l.b16 %v160
  %v461 = vunpack.c.l.b16 %v161
  %v462 = vunpack.c.h.b16 %v161
  %v463 = vunpack.c.l.b16 %v162
  %v464 = vunpack.c.l.b16 %v163
  %v465 = vunpack.c.h.b16 %v163
  %v466 = vunpack.c.l.b16 %v164
  %v467 = vunpack.c.l.b16 %v165
  %v468 = vunpack.c.h.b16 %v165
  %v469 = vunpack.c.l.b16 %v166
  %v470 = vunpack.c.l.b16 %v167
  %v471 = vunpack.c.h.b16 %v167
  %v472 = vunpack.c.l.b16 %v168
  %v473 = vunpack.c.l.b16 %v169
  %v474 = vunpack.c.h.b16 %v169
  %v475 = vunpack.c.l.b16 %v170
  %v476 = vunpack.c.l.b16 %v171
  %v477 = vunpack.c.h.b16 %v171
  %v478 = vunpack.c.l.b16 %v172
  %v479 = vunpack.c.l.b16 %v173
  %v480 = vunpack.c.h.b16 %v173
  %v481 = vunpack.c.l.b16 %v174
  %v482 = vunpack.c.l.b16 %v175
  %v483 = vunpack.c.h.b16 %v175
  %v484 = vunpack.c.l.b16 %v176
  %v485 = vunpack.c.l.b16 %v177
  %v486 = vunpack.c.h.b16 %v177
  %v487 = vunpack.c.l.b16 %v178
  %v488 = vunpack.c.l.b16 %v179
  %v489 = vunpack.c.h.b16 %v179
  %v490 = vunpack.c.l.b16 %v180
  %v491 = vunpack.c.l.b16 %v181
  %v492 = vunpack.c.h.b16 %v181
  %v493 = vunpack.c.l.b16 %v182
  %v494 = vunpack.c.l.b16 %v183
  %v495 = vunpack.c.h.b16 %v183
  %v496 = vunpack.c.l.b16 %v184
  %v497 = vunpack.c.l.b16 %v185
  %v498 = vunpack.c.h.b16 %v185
  %v499 = vunpack.c.l.b16 %v186
  %v500 = vunpack.c.l.b16 %v187
  %v501 = vunpack.c.h.b16 %v187
  %v502 = vunpack.c.l.b16 %v188
  %v503 = vunpack.c.l.b16 %v189
  %v504 = vunpack.c.h.b16 %v189
  %v505 = vunpack.c.l.b16 %v190
  %v506 = vunpack.c.l.b16 %v191
  %v507 = vunpack.c.h.b16 %v191
  %v508 = vunpack.c.l.b16 %v192
  %v509 = vunpack.c.l.b16 %v193
  %v510 = vunpack.c.h.b16 %v193
  %v511 = vunpack.c.l.b16 %v194
  %v512 = vunpack.c.l.b16 %v195
  %v513 = vunpack.c.h.b16 %v195
  %v514 = vunpack.c.l.b16 %v196
  %v515 = vunpack.c.l.b16 %v197
  %v516 = vunpack.c.h.b16 %v197
  %v517 = vunpack.c.l.b16 %v198
  %v518 = vunpack.c.l.b16 %v199
  %v519 = vunpack.c.h.b16 %v199
  %v520 = vunpack.c.l.b16 %v200
  %v521 = vpack.c.b16 %v332, %v329
  %v522 = vpack.c.b16 %v333, %v330
  %v523 = vpack.c.b16 %v334, %v331
  %v524 = vpack.c.b16 %v338, %v335
  %v525 = vpack.c.b16 %v339, %v336
  %v526 = vpack.c.b16 %v340, %v337
  %v527 = vpack.c.b16 %v344, %v341
  %v528 = vpack.c.b16 %v345, %v342
  %v529 = vpack.c.b16 %v346, %v343
  %v530 = vpack.c.b16 %v350, %v347
  %v531 = vpack.c.b16 %v351, %v348
  %v532 = vpack.c.b16 %v352, %v349
  %v533 = vpack.c.b16 %v356, %v353
  %v534 = vpack.c.b16 %v357, %v354
  %v535 = vpack.c.b16 %v358, %v355
  %v536 = vpack.c.b16 %v362, %v359
  %v537 = vpack.c.b16 %v363, %v360
  %v538 = vpack.c.b16 %v364, %v361
  %v539 = vpack.c.b16 %v368, %v365
  %v540 = vpack.c.b16 %v369, %v366
  %v541 = vpack.c.b16 %v370, %v367
  %v542 = vpack.c.b16 %v374, %v371
  %v543 = vpack.c.b16 %v375, %v372
  %v544 = vpack.c.b16 %v376, %v373
  %v545 = vpack.c.b16 %v380, %v377
  %v546 = vpack.c.b16 %v381, %v378
  %v547 = vpack.c.b16 %v382, %v379
  %v548 = vpack.c.b16 %v386, %v383
  %v549 = vpack.c.b16 %v387, %v384
  %v550 = vpack.c.b16 %v388, %v385
  %v551 = vpack.c.b16 %v392, %v389
  %v552 = vpack.c.b16 %v393, %v390
  %v553 = vpack.c.b16 %v394, %v391
  %v554 = vpack.c.b16 %v398, %v395
  %v555 = vpack.c.b16 %v399, %v396
  %v556 = vpack.c.b16 %v400, %v397
  %v557 = vpack.c.b16 %v404, %v401
  %v558 = vpack.c.b16 %v405, %v402
  %v559 = vpack.c.b16 %v406, %v403
  %v560 = vpack.c.b16 %v410, %v407
  %v561 = vpack.c.b16 %v411, %v408
  %v562 = vpack.c.b16 %v412, %v409
  %v563 = vpack.c.b16 %v416, %v413
  %v564 = vpack.c.b16 %v417, %v414
  %v565 = vpack.c.b16 %v418, %v415
  %v566 = vpack.c.b16 %v422, %v419
  %v567 = vpack.c.b16 %v423, %v420
  %v568 = vpack.c.b16 %v424, %v421
  %v569 = vpack.c.b16 %v428, %v425
  %v570 = vpack.c.b16 %v429, %v426
  %v571 = vpack.c.b16 %v430, %v427
  %v572 = vpack.c.b16 %v434, %v431
  %v573 = vpack.c.b16 %v435, %v432
  %v574 = vpack.c.b16 %v436, %v433
  %v575 = vpack.c.b16 %v440, %v437
  %v576 = vpack.c.b16 %v441, %v438
  %v577 = vpack.c.b16 %v442, %v439
  %v578 = vpack.c.b16 %v446, %v443
  %v579 = vpack.c.b16 %v447, %v444
  %v580 = vpack.c.b16 %v448, %v445
  %v581 = vpack.c.b16 %v452, %v449
  %v582 = vpack.c.b16 %v453, %v450
  %v583 = vpack.c.b16 %v454, %v451
  %v584 = vpack.c.b16 %v458, %v455
  %v585 = vpack.c.b16 %v459, %v456
  %v586 = vpack.c.b16 %v460, %v457
  %v587 = vpack.c.b16 %v464, %v461
  %v588 = vpack.c.b16 %v465, %v462
  %v589 = vpack.c.b16 %v466, %v463
  %v590 = vpack.c.b16 %v470, %v467
  %v591 = vpack.c.b16 %v471, %v468
  %v592 = vpack.c.b16 %v472, %v469
  %v593 = vpack.c.b16 %v476, %v473
  %v594 = vpack.c.b16 %v477, %v474
  %v595 = vpack.c.b16 %v478, %v475
  %v596 = vpack.c.b16 %v482, %v479
  %v597 = vpack.c.b16 %v483, %v480
  %v598 = vpack.c.b16 %v484, %v481
  %v599 = vpack.c.b16 %v488, %v485
  %v600 = vpack.c.b16 %v489, %v486
  %v601 = vpack.c.b16 %v490, %v487
  %v602 = vpack.c.b16 %v494, %v491
  %v603 = vpack.c.b16 %v495, %v492
  %v604 = vpack.c.b16 %v496, %v493
  %v605 = vpack.c.b16 %v500, %v497
  %v606 = vpack.c.b16 %v501, %v498
  %v607 = vpack.c.b16 %v502, %v499
  %v608 = vpack.c.b16 %v506, %v503
  %v609 = vpack.c.b16 %v507, %v504
  %v610 = vpack.c.b16 %v508, %v505
  %v611 = vpack.c.b16 %v512, %v509
  %v612 = vpack.c.b16 %v513, %v510
  %v613 = vpack.c.b16 %v514, %v511
  %v614 = vpack.c.b16 %v518, %v515
  %v615 = vpack.c.b16 %v519, %v516
  %v616 = vpack.c.b16 %v520, %v517
  %713 = vmatprep.subr.bf16.mxu0 %v543
  %714 = vmatpush1.bf16.msra.mxu0 %v542
  %715 = vmatprep.subr.bf16.mxu0 %v540
  %716 = vmatpush1.bf16.msra.mxu0 %v539
  %717 = vmatprep.subr.bf16.mxu0 %v537
  %718 = vmatpush1.bf16.msra.mxu0 %v536
  %719 = vmatprep.subr.bf16.mxu0 %v534
  %720 = vmatpush1.bf16.msra.mxu0 %v533
  %721 = vmatprep.subr.bf16.mxu0 %v531
  %722 = vmatpush1.bf16.msra.mxu0 %v530
  %723 = vmatprep.subr.bf16.mxu0 %v528
  %724 = vmatpush1.bf16.msra.mxu0 %v527
  %725 = vmatprep.subr.bf16.mxu0 %v525
  %726 = vmatpush1.bf16.msra.mxu0 %v524
  %727 = vmatprep.subr.bf16.mxu0 %v522
  %728 = vmatpush1.bf16.msra.mxu0 %v521
  %729 = vmatprep.subr.bf16.mxu0 %v567
  %730 = vmatpush2.bf16.msra.mxu0 %v566
  %731 = vmatprep.subr.bf16.mxu0 %v564
  %732 = vmatpush2.bf16.msra.mxu0 %v563
  %733 = vmatprep.subr.bf16.mxu0 %v561
  %734 = vmatpush2.bf16.msra.mxu0 %v560
  %735 = vmatprep.subr.bf16.mxu0 %v558
  %736 = vmatpush2.bf16.msra.mxu0 %v557
  %737 = vmatprep.subr.bf16.mxu0 %v555
  %738 = vmatpush2.bf16.msra.mxu0 %v554
  %739 = vmatprep.subr.bf16.mxu0 %v552
  %740 = vmatpush2.bf16.msra.mxu0 %v551
  %741 = vmatprep.subr.bf16.mxu0 %v549
  %742 = vmatpush2.bf16.msra.mxu0 %v548
  %743 = vmatprep.subr.bf16.mxu0 %v546
  %744 = vmatpush2.bf16.msra.mxu0 %v545
  %745 = vmatprep.mubr.bf16.mxu0 %v70
  %746 = vmatmul.mubr.bf16.gmra.mxu0 %v69
  %v747 = vpop.f32.mrf.mxu0
  %v748 = vadd.f32 0.0, %v747
  %v749 = vpop.f32.mrf.mxu0
  %v750 = vadd.f32 0.0, %v749
  %v751 = vpop.f32.mrf.mxu0
  %v752 = vpop.f32.mrf.mxu0
  %753 = vdwg.mxu0
  %754 = vmatprep.subr.bf16.mxu0 %v591
  %755 = vmatpush1.bf16.msra.mxu0 %v590
  %756 = vmatprep.subr.bf16.mxu0 %v588
  %757 = vmatpush1.bf16.msra.mxu0 %v587
  %758 = vmatprep.subr.bf16.mxu0 %v585
  %759 = vmatpush1.bf16.msra.mxu0 %v584
  %760 = vmatprep.subr.bf16.mxu0 %v582
  %761 = vmatpush1.bf16.msra.mxu0 %v581
  %762 = vmatprep.subr.bf16.mxu0 %v579
  %763 = vmatpush1.bf16.msra.mxu0 %v578
  %764 = vmatprep.subr.bf16.mxu0 %v576
  %765 = vmatpush1.bf16.msra.mxu0 %v575
  %766 = vmatprep.subr.bf16.mxu0 %v573
  %767 = vmatpush1.bf16.msra.mxu0 %v572
  %768 = vmatprep.subr.bf16.mxu0 %v570
  %769 = vmatpush1.bf16.msra.mxu0 %v569
  %770 = vmatprep.subr.bf16.mxu0 %v615
  %771 = vmatpush2.bf16.msra.mxu0 %v614
  %772 = vmatprep.subr.bf16.mxu0 %v612
  %773 = vmatpush2.bf16.msra.mxu0 %v611
  %774 = vmatprep.subr.bf16.mxu0 %v609
  %775 = vmatpush2.bf16.msra.mxu0 %v608
  %776 = vmatprep.subr.bf16.mxu0 %v606
  %777 = vmatpush2.bf16.msra.mxu0 %v605
  %778 = vmatprep.subr.bf16.mxu0 %v603
  %779 = vmatpush2.bf16.msra.mxu0 %v602
  %780 = vmatprep.subr.bf16.mxu0 %v600
  %781 = vmatpush2.bf16.msra.mxu0 %v599
  %782 = vmatprep.subr.bf16.mxu0 %v597
  %783 = vmatpush2.bf16.msra.mxu0 %v596
  %784 = vmatprep.subr.bf16.mxu0 %v594
  %785 = vmatpush2.bf16.msra.mxu0 %v593
  %786 = vmatprep.mubr.bf16.mxu0 %v72
  %787 = vmatmul.mubr.bf16.gmra.mxu0 %v71
  %v788 = vpop.f32.mrf.mxu0
  %v789 = vadd.f32 %v748, %v788
  %v790 = vpop.f32.mrf.mxu0
  %v791 = vadd.f32 %v750, %v790
  %v792 = vpop.f32.mrf.mxu0
  %v793 = vpop.f32.mrf.mxu0
  %794 = vdwg.mxu0
  %795 = vmatprep.subr.bf16.mxu0 0
  %796 = vmatpush1.bf16.msra.mxu0 %v544
  %797 = vmatprep.subr.bf16.mxu0 0
  %798 = vmatpush1.bf16.msra.mxu0 %v541
  %799 = vmatprep.subr.bf16.mxu0 0
  %800 = vmatpush1.bf16.msra.mxu0 %v538
  %801 = vmatprep.subr.bf16.mxu0 0
  %802 = vmatpush1.bf16.msra.mxu0 %v535
  %803 = vmatprep.subr.bf16.mxu0 0
  %804 = vmatpush1.bf16.msra.mxu0 %v532
  %805 = vmatprep.subr.bf16.mxu0 0
  %806 = vmatpush1.bf16.msra.mxu0 %v529
  %807 = vmatprep.subr.bf16.mxu0 0
  %808 = vmatpush1.bf16.msra.mxu0 %v526
  %809 = vmatprep.subr.bf16.mxu0 0
  %810 = vmatpush1.bf16.msra.mxu0 %v523
  %811 = vmatprep.subr.bf16.mxu0 0
  %812 = vmatpush2.bf16.msra.mxu0 %v568
  %813 = vmatprep.subr.bf16.mxu0 0
  %814 = vmatpush2.bf16.msra.mxu0 %v565
  %815 = vmatprep.subr.bf16.mxu0 0
  %816 = vmatpush2.bf16.msra.mxu0 %v562
  %817 = vmatprep.subr.bf16.mxu0 0
  %818 = vmatpush2.bf16.msra.mxu0 %v559
  %819 = vmatprep.subr.bf16.mxu0 0
  %820 = vmatpush2.bf16.msra.mxu0 %v556
  %821 = vmatprep.subr.bf16.mxu0 0
  %822 = vmatpush2.bf16.msra.mxu0 %v553
  %823 = vmatprep.subr.bf16.mxu0 0
  %824 = vmatpush2.bf16.msra.mxu0 %v550
  %825 = vmatprep.subr.bf16.mxu0 0
  %826 = vmatpush2.bf16.msra.mxu0 %v547
  %827 = vmatprep.mubr.bf16.mxu0 %v70
  %828 = vmatmul.mubr.bf16.gmra.mxu0 %v69
  %v829 = vpop.f32.mrf.mxu0
  %v830 = vadd.f32 0.0, %v829
  %v831 = vpop.f32.mrf.mxu0
  %v832 = vpop.f32.mrf.mxu0
  %v833 = vpop.f32.mrf.mxu0
  %834 = vdwg.mxu0
  %835 = vmatprep.subr.bf16.mxu0 0
  %836 = vmatpush1.bf16.msra.mxu0 %v592
  %837 = vmatprep.subr.bf16.mxu0 0
  %838 = vmatpush1.bf16.msra.mxu0 %v589
  %839 = vmatprep.subr.bf16.mxu0 0
  %840 = vmatpush1.bf16.msra.mxu0 %v586
  %841 = vmatprep.subr.bf16.mxu0 0
  %842 = vmatpush1.bf16.msra.mxu0 %v583
  %843 = vmatprep.subr.bf16.mxu0 0
  %844 = vmatpush1.bf16.msra.mxu0 %v580
  %845 = vmatprep.subr.bf16.mxu0 0
  %846 = vmatpush1.bf16.msra.mxu0 %v577
  %847 = vmatprep.subr.bf16.mxu0 0
  %848 = vmatpush1.bf16.msra.mxu0 %v574
  %849 = vmatprep.subr.bf16.mxu0 0
  %850 = vmatpush1.bf16.msra.mxu0 %v571
  %851 = vmatprep.subr.bf16.mxu0 0
  %852 = vmatpush2.bf16.msra.mxu0 %v616
  %853 = vmatprep.subr.bf16.mxu0 0
  %854 = vmatpush2.bf16.msra.mxu0 %v613
  %855 = vmatprep.subr.bf16.mxu0 0
  %856 = vmatpush2.bf16.msra.mxu0 %v610
  %857 = vmatprep.subr.bf16.mxu0 0
  %858 = vmatpush2.bf16.msra.mxu0 %v607
  %859 = vmatprep.subr.bf16.mxu0 0
  %860 = vmatpush2.bf16.msra.mxu0 %v604
  %861 = vmatprep.subr.bf16.mxu0 0
  %862 = vmatpush2.bf16.msra.mxu0 %v601
  %863 = vmatprep.subr.bf16.mxu0 0
  %864 = vmatpush2.bf16.msra.mxu0 %v598
  %865 = vmatprep.subr.bf16.mxu0 0
  %866 = vmatpush2.bf16.msra.mxu0 %v595
  %867 = vmatprep.mubr.bf16.mxu0 %v72
  %868 = vmatmul.mubr.bf16.gmra.mxu0 %v71
  %v869 = vpop.f32.mrf.mxu0
  %v870 = vadd.f32 %v830, %v869
  %v871 = vpop.f32.mrf.mxu0
  %v872 = vpop.f32.mrf.mxu0
  %v873 = vpop.f32.mrf.mxu0
  %874 = vdwg.mxu0
  %v875 = vld [vmem:[%s2] sm:$0x3]
  %v877 = vlaneseq
  %v878 = vshrl.u32 %v877, 7
  %v879 = vsub.s32 0, %v878
  %v880 = vrot.slane %v875, %v879
  %v881 = vlaneseq
  %v882 = vshrl.u32 %v881, 7
  %v883 = vsub.s32 1, %v882
  %v884 = vrot.slane %v875, %v883
  %v887 = vadd.f32 %v789, %v880
  %v888 = vadd.f32 %v791, %v884
  %v889 = vmax.f32 %v887, 0.0
  %v890 = vmax.f32 %v888, 0.0
  %v891 = vlaneseq
  %v892 = vand.u32 %v891, 127
  %vm893 = vcmp.lt.s32.totalorder %v892, 6
  %v894 = vsel %vm893, %v870, 0.0
  %895 = vadd.xlane.f32.xlu0 %v894
  %v896 = vpop.xlane.xlu0 %895
  %v897 = vrcp.pop 6.0
  %v898 = vmul.f32 %v896, %v897
  %v899 = vsub.f32 %v870, %v898
  %v900 = vmul.f32 %v899, %v899
  %v901 = vsel %vm893, %v900, 0.0
  %902 = vadd.xlane.f32.xlu0 %v901
  %v903 = vpop.xlane.xlu0 %902
  %v904 = vrcp.pop 5.0
  %v905 = vmul.f32 %v903, %v904
  %v906 = vrsqrt.pop %v905
  %v907 = vmul.f32 %v905, %v906
  %vm908 = vcmp.eq.f32.partialorder %v905, inf
  %v909 = vsel %vm908, %v905, %v907
  %vm910 = vcmp.eq.f32.partialorder %v905, 0.0
  %v911 = vand.u32 %v905, 2147483648
  %v912 = vsel %vm910, %v911, %v909
  %v913 = vsel %vm893, %v870, -inf
  %914 = vmax.xlane.f32.xlu0 %v913
  %v915 = vpop.xlane.xlu0 %914
  %v916 = vpack.c.bf16 %v889, %v889
  %v917 = vpack.c.bf16 %v890, %v890
  %v918 = vld [vmem:[%s3] sm:$0xf]
  %v919 = vld [vmem:[%s3 + $0x4] sm:$0xf]
  %v920 = vld [vmem:[%s3 + $0x8] sm:$0xf]
  %v921 = vld [vmem:[%s3 + $0xc] sm:$0xf]
  %v922 = vld [vmem:[%s3 + $0x10] sm:$0xf]
  %v923 = vld [vmem:[%s3 + $0x14] sm:$0xf]
  %v924 = vld [vmem:[%s3 + $0x18] sm:$0xf]
  %v925 = vld [vmem:[%s3 + $0x1c] sm:$0xf]
  %v926 = vld [vmem:[%s3 + $0x20] sm:$0xf]
  %v927 = vld [vmem:[%s3 + $0x24] sm:$0xf]
  %v928 = vld [vmem:[%s3 + $0x28] sm:$0xf]
  %v929 = vld [vmem:[%s3 + $0x2c] sm:$0xf]
  %v930 = vld [vmem:[%s3 + $0x30] sm:$0xf]
  %v931 = vld [vmem:[%s3 + $0x34] sm:$0xf]
  %v932 = vld [vmem:[%s3 + $0x38] sm:$0xf]
  %v933 = vld [vmem:[%s3 + $0x3c] sm:$0xf]
  %v934 = vld [vmem:[%s3 + $0x40] sm:$0xf]
  %v935 = vld [vmem:[%s3 + $0x44] sm:$0xf]
  %v936 = vld [vmem:[%s3 + $0x48] sm:$0xf]
  %v937 = vld [vmem:[%s3 + $0x4c] sm:$0xf]
  %v938 = vld [vmem:[%s3 + $0x50] sm:$0xf]
  %v939 = vld [vmem:[%s3 + $0x54] sm:$0xf]
  %v940 = vld [vmem:[%s3 + $0x58] sm:$0xf]
  %v941 = vld [vmem:[%s3 + $0x5c] sm:$0xf]
  %v942 = vld [vmem:[%s3 + $0x60] sm:$0xf]
  %v943 = vld [vmem:[%s3 + $0x64] sm:$0xf]
  %v944 = vld [vmem:[%s3 + $0x68] sm:$0xf]
  %v945 = vld [vmem:[%s3 + $0x6c] sm:$0xf]
  %v946 = vld [vmem:[%s3 + $0x70] sm:$0xf]
  %v947 = vld [vmem:[%s3 + $0x74] sm:$0xf]
  %v948 = vld [vmem:[%s3 + $0x78] sm:$0xf]
  %v949 = vld [vmem:[%s3 + $0x7c] sm:$0xf]
  %v950 = vld [vmem:[%s4] sm:$0x1]
  %v952 = vlaneseq
  %v953 = vshrl.u32 %v952, 7
  %v954 = vsub.s32 0, %v953
  %v955 = vrot.slane %v950, %v954
  %v989 = vunpack.c.l.b16 %v918
  %v990 = vunpack.c.l.b16 %v919
  %v991 = vunpack.c.l.b16 %v920
  %v992 = vunpack.c.l.b16 %v921
  %v993 = vunpack.c.l.b16 %v922
  %v994 = vunpack.c.l.b16 %v923
  %v995 = vunpack.c.l.b16 %v924
  %v996 = vunpack.c.l.b16 %v925
  %v997 = vunpack.c.l.b16 %v926
  %v998 = vunpack.c.l.b16 %v927
  %v999 = vunpack.c.l.b16 %v928
  %v1000 = vunpack.c.l.b16 %v929
  %v1001 = vunpack.c.l.b16 %v930
  %v1002 = vunpack.c.l.b16 %v931
  %v1003 = vunpack.c.l.b16 %v932
  %v1004 = vunpack.c.l.b16 %v933
  %v1005 = vunpack.c.l.b16 %v934
  %v1006 = vunpack.c.l.b16 %v935
  %v1007 = vunpack.c.l.b16 %v936
  %v1008 = vunpack.c.l.b16 %v937
  %v1009 = vunpack.c.l.b16 %v938
  %v1010 = vunpack.c.l.b16 %v939
  %v1011 = vunpack.c.l.b16 %v940
  %v1012 = vunpack.c.l.b16 %v941
  %v1013 = vunpack.c.l.b16 %v942
  %v1014 = vunpack.c.l.b16 %v943
  %v1015 = vunpack.c.l.b16 %v944
  %v1016 = vunpack.c.l.b16 %v945
  %v1017 = vunpack.c.l.b16 %v946
  %v1018 = vunpack.c.l.b16 %v947
  %v1019 = vunpack.c.l.b16 %v948
  %v1020 = vunpack.c.l.b16 %v949
  %v1021 = vpack.c.b16 %v990, %v989
  %v1022 = vpack.c.b16 %v992, %v991
  %v1023 = vpack.c.b16 %v994, %v993
  %v1024 = vpack.c.b16 %v996, %v995
  %v1025 = vpack.c.b16 %v998, %v997
  %v1026 = vpack.c.b16 %v1000, %v999
  %v1027 = vpack.c.b16 %v1002, %v1001
  %v1028 = vpack.c.b16 %v1004, %v1003
  %v1029 = vpack.c.b16 %v1006, %v1005
  %v1030 = vpack.c.b16 %v1008, %v1007
  %v1031 = vpack.c.b16 %v1010, %v1009
  %v1032 = vpack.c.b16 %v1012, %v1011
  %v1033 = vpack.c.b16 %v1014, %v1013
  %v1034 = vpack.c.b16 %v1016, %v1015
  %v1035 = vpack.c.b16 %v1018, %v1017
  %v1036 = vpack.c.b16 %v1020, %v1019
  %1053 = vmatprep.subr.bf16.mxu0 0
  %1054 = vmatpush1.bf16.msra.mxu0 %v1028
  %1055 = vmatprep.subr.bf16.mxu0 0
  %1056 = vmatpush1.bf16.msra.mxu0 %v1027
  %1057 = vmatprep.subr.bf16.mxu0 0
  %1058 = vmatpush1.bf16.msra.mxu0 %v1026
  %1059 = vmatprep.subr.bf16.mxu0 0
  %1060 = vmatpush1.bf16.msra.mxu0 %v1025
  %1061 = vmatprep.subr.bf16.mxu0 0
  %1062 = vmatpush1.bf16.msra.mxu0 %v1024
  %1063 = vmatprep.subr.bf16.mxu0 0
  %1064 = vmatpush1.bf16.msra.mxu0 %v1023
  %1065 = vmatprep.subr.bf16.mxu0 0
  %1066 = vmatpush1.bf16.msra.mxu0 %v1022
  %1067 = vmatprep.subr.bf16.mxu0 0
  %1068 = vmatpush1.bf16.msra.mxu0 %v1021
  %1069 = vmatprep.subr.bf16.mxu0 0
  %1070 = vmatpush2.bf16.msra.mxu0 %v1036
  %1071 = vmatprep.subr.bf16.mxu0 0
  %1072 = vmatpush2.bf16.msra.mxu0 %v1035
  %1073 = vmatprep.subr.bf16.mxu0 0
  %1074 = vmatpush2.bf16.msra.mxu0 %v1034
  %1075 = vmatprep.subr.bf16.mxu0 0
  %1076 = vmatpush2.bf16.msra.mxu0 %v1033
  %1077 = vmatprep.subr.bf16.mxu0 0
  %1078 = vmatpush2.bf16.msra.mxu0 %v1032
  %1079 = vmatprep.subr.bf16.mxu0 0
  %1080 = vmatpush2.bf16.msra.mxu0 %v1031
  %1081 = vmatprep.subr.bf16.mxu0 0
  %1082 = vmatpush2.bf16.msra.mxu0 %v1030
  %1083 = vmatprep.subr.bf16.mxu0 0
  %1084 = vmatpush2.bf16.msra.mxu0 %v1029
  %1085 = vmatprep.mubr.bf16.mxu0 %v917
  %1086 = vmatmul.mubr.bf16.gmra.mxu0 %v916
  %v1087 = vpop.f32.mrf.mxu0
  %v1088 = vadd.f32 %v955, %v1087
  %v1089 = vpop.f32.mrf.mxu0
  %v1090 = vpop.f32.mrf.mxu0
  %v1091 = vpop.f32.mrf.mxu0
  %1092 = vdwg.mxu0
  %v1093 = vmax.f32 %v1088, 0.0
  %1094 = vst [vmem:[%s15] sm:$0xff] %v1093
  %v1095 = vpack.c.bf16 %v1093, %v1093
  %v1096 = vld [vmem:[%s5] sm:$0xff]
  %v1097 = vld [vmem:[%s5 + $0x8] sm:$0xff]
  %v1098 = vld [vmem:[%s5 + $0x10] sm:$0xff]
  %v1099 = vld [vmem:[%s5 + $0x18] sm:$0xff]
  %v1100 = vld [vmem:[%s5 + $0x20] sm:$0xff]
  %v1101 = vld [vmem:[%s5 + $0x28] sm:$0xff]
  %v1102 = vld [vmem:[%s5 + $0x30] sm:$0xff]
  %v1103 = vld [vmem:[%s5 + $0x38] sm:$0xff]
  %v1104 = vld [vmem:[%s5 + $0x40] sm:$0xff]
  %v1105 = vld [vmem:[%s5 + $0x48] sm:$0xff]
  %v1106 = vld [vmem:[%s5 + $0x50] sm:$0xff]
  %v1107 = vld [vmem:[%s5 + $0x58] sm:$0xff]
  %v1108 = vld [vmem:[%s5 + $0x60] sm:$0xff]
  %v1109 = vld [vmem:[%s5 + $0x68] sm:$0xff]
  %v1110 = vld [vmem:[%s5 + $0x70] sm:$0xff]
  %v1111 = vld [vmem:[%s5 + $0x78] sm:$0xff]
  %v1112 = vpack.c.bf16 %v870, %v870
  %v1113 = vld [vmem:[%s6] sm:$0xff]
  %v1114 = vld [vmem:[%s6 + $0x8] sm:$0xff]
  %v1115 = vld [vmem:[%s6 + $0x10] sm:$0xff]
  %v1116 = vld [vmem:[%s6 + $0x18] sm:$0xff]
  %v1117 = vld [vmem:[%s6 + $0x20] sm:$0xff]
  %v1118 = vld [vmem:[%s6 + $0x28] sm:$0xff]
  %v1119 = vld [vmem:[%s6 + $0x30] sm:$0xff]
  %v1120 = vld [vmem:[%s6 + $0x38] sm:$0xff]
  %v1121 = vld [vmem:[%s6 + $0x40] sm:$0xff]
  %v1122 = vld [vmem:[%s6 + $0x48] sm:$0xff]
  %v1123 = vld [vmem:[%s6 + $0x50] sm:$0xff]
  %v1124 = vld [vmem:[%s6 + $0x58] sm:$0xff]
  %v1125 = vld [vmem:[%s6 + $0x60] sm:$0xff]
  %v1126 = vld [vmem:[%s6 + $0x68] sm:$0xff]
  %v1127 = vld [vmem:[%s6 + $0x70] sm:$0xff]
  %v1128 = vld [vmem:[%s6 + $0x78] sm:$0xff]
  %v1145 = vunpack.c.l.b16 %v1113
  %v1146 = vunpack.c.h.b16 %v1113
  %v1147 = vunpack.c.l.b16 %v1114
  %v1148 = vunpack.c.h.b16 %v1114
  %v1149 = vunpack.c.l.b16 %v1115
  %v1150 = vunpack.c.h.b16 %v1115
  %v1151 = vunpack.c.l.b16 %v1116
  %v1152 = vunpack.c.h.b16 %v1116
  %v1153 = vunpack.c.l.b16 %v1117
  %v1154 = vunpack.c.h.b16 %v1117
  %v1155 = vunpack.c.l.b16 %v1118
  %v1156 = vunpack.c.h.b16 %v1118
  %v1157 = vunpack.c.l.b16 %v1119
  %v1158 = vunpack.c.h.b16 %v1119
  %v1159 = vunpack.c.l.b16 %v1120
  %v1160 = vunpack.c.h.b16 %v1120
  %v1161 = vunpack.c.l.b16 %v1121
  %v1162 = vunpack.c.h.b16 %v1121
  %v1163 = vunpack.c.l.b16 %v1122
  %v1164 = vunpack.c.h.b16 %v1122
  %v1165 = vunpack.c.l.b16 %v1123
  %v1166 = vunpack.c.h.b16 %v1123
  %v1167 = vunpack.c.l.b16 %v1124
  %v1168 = vunpack.c.h.b16 %v1124
  %v1169 = vunpack.c.l.b16 %v1125
  %v1170 = vunpack.c.h.b16 %v1125
  %v1171 = vunpack.c.l.b16 %v1126
  %v1172 = vunpack.c.h.b16 %v1126
  %v1173 = vunpack.c.l.b16 %v1127
  %v1174 = vunpack.c.h.b16 %v1127
  %v1175 = vunpack.c.l.b16 %v1128
  %v1176 = vunpack.c.h.b16 %v1128
  %v1177 = vpack.c.b16 %v1147, %v1145
  %v1178 = vpack.c.b16 %v1148, %v1146
  %v1179 = vpack.c.b16 %v1151, %v1149
  %v1180 = vpack.c.b16 %v1152, %v1150
  %v1181 = vpack.c.b16 %v1155, %v1153
  %v1182 = vpack.c.b16 %v1156, %v1154
  %v1183 = vpack.c.b16 %v1159, %v1157
  %v1184 = vpack.c.b16 %v1160, %v1158
  %v1185 = vpack.c.b16 %v1163, %v1161
  %v1186 = vpack.c.b16 %v1164, %v1162
  %v1187 = vpack.c.b16 %v1167, %v1165
  %v1188 = vpack.c.b16 %v1168, %v1166
  %v1189 = vpack.c.b16 %v1171, %v1169
  %v1190 = vpack.c.b16 %v1172, %v1170
  %v1191 = vpack.c.b16 %v1175, %v1173
  %v1192 = vpack.c.b16 %v1176, %v1174
  %1209 = vmatprep.subr.bf16.mxu0 %v1192
  %1210 = vmatpush1.bf16.msra.mxu0 %v1191
  %1211 = vmatprep.subr.bf16.mxu0 %v1190
  %1212 = vmatpush1.bf16.msra.mxu0 %v1189
  %1213 = vmatprep.subr.bf16.mxu0 %v1188
  %1214 = vmatpush1.bf16.msra.mxu0 %v1187
  %1215 = vmatprep.subr.bf16.mxu0 %v1186
  %1216 = vmatpush1.bf16.msra.mxu0 %v1185
  %1217 = vmatprep.subr.bf16.mxu0 %v1184
  %1218 = vmatpush1.bf16.msra.mxu0 %v1183
  %1219 = vmatprep.subr.bf16.mxu0 %v1182
  %1220 = vmatpush1.bf16.msra.mxu0 %v1181
  %1221 = vmatprep.subr.bf16.mxu0 %v1180
  %1222 = vmatpush1.bf16.msra.mxu0 %v1179
  %1223 = vmatprep.subr.bf16.mxu0 %v1178
  %1224 = vmatpush1.bf16.msra.mxu0 %v1177
  %1225 = vmatprep.subr.bf16.mxu0 0
  %1226 = vmatpush2.bf16.msra.mxu0 0
  %1227 = vmatprep.subr.bf16.mxu0 0
  %1228 = vmatpush2.bf16.msra.mxu0 0
  %1229 = vmatprep.subr.bf16.mxu0 0
  %1230 = vmatpush2.bf16.msra.mxu0 0
  %1231 = vmatprep.subr.bf16.mxu0 0
  %1232 = vmatpush2.bf16.msra.mxu0 0
  %1233 = vmatprep.subr.bf16.mxu0 0
  %1234 = vmatpush2.bf16.msra.mxu0 0
  %1235 = vmatprep.subr.bf16.mxu0 0
  %1236 = vmatpush2.bf16.msra.mxu0 0
  %1237 = vmatprep.subr.bf16.mxu0 0
  %1238 = vmatpush2.bf16.msra.mxu0 0
  %1239 = vmatprep.subr.bf16.mxu0 0
  %1240 = vmatpush2.bf16.msra.mxu0 0
  %1241 = vmatprep.mubr.bf16.mxu0 0
  %1242 = vmatmul.mubr.bf16.gmra.mxu0 %v1112
  %v1243 = vpop.f32.mrf.mxu0
  %v1244 = vadd.f32 0.0, %v1243
  %v1245 = vpop.f32.mrf.mxu0
  %v1246 = vadd.f32 0.0, %v1245
  %v1247 = vpop.f32.mrf.mxu0
  %v1248 = vpop.f32.mrf.mxu0
  %1249 = vdwg.mxu0
  %v1266 = vunpack.c.l.b16 %v1096
  %v1267 = vunpack.c.h.b16 %v1096
  %v1268 = vunpack.c.l.b16 %v1097
  %v1269 = vunpack.c.h.b16 %v1097
  %v1270 = vunpack.c.l.b16 %v1098
  %v1271 = vunpack.c.h.b16 %v1098
  %v1272 = vunpack.c.l.b16 %v1099
  %v1273 = vunpack.c.h.b16 %v1099
  %v1274 = vunpack.c.l.b16 %v1100
  %v1275 = vunpack.c.h.b16 %v1100
  %v1276 = vunpack.c.l.b16 %v1101
  %v1277 = vunpack.c.h.b16 %v1101
  %v1278 = vunpack.c.l.b16 %v1102
  %v1279 = vunpack.c.h.b16 %v1102
  %v1280 = vunpack.c.l.b16 %v1103
  %v1281 = vunpack.c.h.b16 %v1103
  %v1282 = vunpack.c.l.b16 %v1104
  %v1283 = vunpack.c.h.b16 %v1104
  %v1284 = vunpack.c.l.b16 %v1105
  %v1285 = vunpack.c.h.b16 %v1105
  %v1286 = vunpack.c.l.b16 %v1106
  %v1287 = vunpack.c.h.b16 %v1106
  %v1288 = vunpack.c.l.b16 %v1107
  %v1289 = vunpack.c.h.b16 %v1107
  %v1290 = vunpack.c.l.b16 %v1108
  %v1291 = vunpack.c.h.b16 %v1108
  %v1292 = vunpack.c.l.b16 %v1109
  %v1293 = vunpack.c.h.b16 %v1109
  %v1294 = vunpack.c.l.b16 %v1110
  %v1295 = vunpack.c.h.b16 %v1110
  %v1296 = vunpack.c.l.b16 %v1111
  %v1297 = vunpack.c.h.b16 %v1111
  %v1298 = vpack.c.b16 %v1268, %v1266
  %v1299 = vpack.c.b16 %v1269, %v1267
  %v1300 = vpack.c.b16 %v1272, %v1270
  %v1301 = vpack.c.b16 %v1273, %v1271
  %v1302 = vpack.c.b16 %v1276, %v1274
  %v1303 = vpack.c.b16 %v1277, %v1275
  %v1304 = vpack.c.b16 %v1280, %v1278
  %v1305 = vpack.c.b16 %v1281, %v1279
  %v1306 = vpack.c.b16 %v1284, %v1282
  %v1307 = vpack.c.b16 %v1285, %v1283
  %v1308 = vpack.c.b16 %v1288, %v1286
  %v1309 = vpack.c.b16 %v1289, %v1287
  %v1310 = vpack.c.b16 %v1292, %v1290
  %v1311 = vpack.c.b16 %v1293, %v1291
  %v1312 = vpack.c.b16 %v1296, %v1294
  %v1313 = vpack.c.b16 %v1297, %v1295
  %1330 = vmatprep.subr.bf16.mxu0 %v1313
  %1331 = vmatpush1.bf16.msra.mxu0 %v1312
  %1332 = vmatprep.subr.bf16.mxu0 %v1311
  %1333 = vmatpush1.bf16.msra.mxu0 %v1310
  %1334 = vmatprep.subr.bf16.mxu0 %v1309
  %1335 = vmatpush1.bf16.msra.mxu0 %v1308
  %1336 = vmatprep.subr.bf16.mxu0 %v1307
  %1337 = vmatpush1.bf16.msra.mxu0 %v1306
  %1338 = vmatprep.subr.bf16.mxu0 %v1305
  %1339 = vmatpush1.bf16.msra.mxu0 %v1304
  %1340 = vmatprep.subr.bf16.mxu0 %v1303
  %1341 = vmatpush1.bf16.msra.mxu0 %v1302
  %1342 = vmatprep.subr.bf16.mxu0 %v1301
  %1343 = vmatpush1.bf16.msra.mxu0 %v1300
  %1344 = vmatprep.subr.bf16.mxu0 %v1299
  %1345 = vmatpush1.bf16.msra.mxu0 %v1298
  %1346 = vmatprep.subr.bf16.mxu0 0
  %1347 = vmatpush2.bf16.msra.mxu0 0
  %1348 = vmatprep.subr.bf16.mxu0 0
  %1349 = vmatpush2.bf16.msra.mxu0 0
  %1350 = vmatprep.subr.bf16.mxu0 0
  %1351 = vmatpush2.bf16.msra.mxu0 0
  %1352 = vmatprep.subr.bf16.mxu0 0
  %1353 = vmatpush2.bf16.msra.mxu0 0
  %1354 = vmatprep.subr.bf16.mxu0 0
  %1355 = vmatpush2.bf16.msra.mxu0 0
  %1356 = vmatprep.subr.bf16.mxu0 0
  %1357 = vmatpush2.bf16.msra.mxu0 0
  %1358 = vmatprep.subr.bf16.mxu0 0
  %1359 = vmatpush2.bf16.msra.mxu0 0
  %1360 = vmatprep.subr.bf16.mxu0 0
  %1361 = vmatpush2.bf16.msra.mxu0 0
  %1362 = vmatprep.mubr.bf16.mxu0 0
  %1363 = vmatmul.mubr.bf16.gmra.mxu0 %v1095
  %v1364 = vpop.f32.mrf.mxu0
  %v1365 = vadd.f32 %v1244, %v1364
  %v1366 = vpop.f32.mrf.mxu0
  %v1367 = vadd.f32 %v1246, %v1366
  %v1368 = vpop.f32.mrf.mxu0
  %v1369 = vpop.f32.mrf.mxu0
  %1370 = vdwg.mxu0
  %v1371 = vld [vmem:[%s9] sm:$0x3]
  %v1373 = vlaneseq
  %v1374 = vshrl.u32 %v1373, 7
  %v1375 = vsub.s32 0, %v1374
  %v1376 = vrot.slane %v1371, %v1375
  %v1377 = vlaneseq
  %v1378 = vshrl.u32 %v1377, 7
  %v1379 = vsub.s32 1, %v1378
  %v1380 = vrot.slane %v1371, %v1379
  %v1383 = vadd.f32 %v1365, %v1376
  %v1384 = vadd.f32 %v1367, %v1380
  %v1385 = vld [vmem:[%s7] sm:$0x3]
  %v1387 = vlaneseq
  %v1388 = vshrl.u32 %v1387, 7
  %v1389 = vsub.s32 0, %v1388
  %v1390 = vrot.slane %v1385, %v1389
  %v1391 = vlaneseq
  %v1392 = vshrl.u32 %v1391, 7
  %v1393 = vsub.s32 1, %v1392
  %v1394 = vrot.slane %v1385, %v1393
  %v1397 = vmul.f32 %v912, %v1390
  %v1398 = vmul.f32 %v912, %v1394
  %v1399 = vadd.f32 %v1383, %v1397
  %v1400 = vadd.f32 %v1384, %v1398
  %v1401 = vld [vmem:[%s8] sm:$0x3]
  %v1403 = vlaneseq
  %v1404 = vshrl.u32 %v1403, 7
  %v1405 = vsub.s32 0, %v1404
  %v1406 = vrot.slane %v1401, %v1405
  %v1407 = vlaneseq
  %v1408 = vshrl.u32 %v1407, 7
  %v1409 = vsub.s32 1, %v1408
  %v1410 = vrot.slane %v1401, %v1409
  %v1413 = vmul.f32 %v915, %v1406
  %v1414 = vmul.f32 %v915, %v1410
  %v1415 = vadd.f32 %v1399, %v1413
  %v1416 = vadd.f32 %v1400, %v1414
  %v1417 = vmax.f32 %v1415, 0.0
  %v1418 = vmax.f32 %v1416, 0.0
  %v1419 = vpack.c.bf16 %v1417, %v1417
  %v1420 = vpack.c.bf16 %v1418, %v1418
  %v1421 = vld [vmem:[%s10] sm:$0xf]
  %v1422 = vld [vmem:[%s10 + $0x4] sm:$0xf]
  %v1423 = vld [vmem:[%s10 + $0x8] sm:$0xf]
  %v1424 = vld [vmem:[%s10 + $0xc] sm:$0xf]
  %v1425 = vld [vmem:[%s10 + $0x10] sm:$0xf]
  %v1426 = vld [vmem:[%s10 + $0x14] sm:$0xf]
  %v1427 = vld [vmem:[%s10 + $0x18] sm:$0xf]
  %v1428 = vld [vmem:[%s10 + $0x1c] sm:$0xf]
  %v1429 = vld [vmem:[%s10 + $0x20] sm:$0xf]
  %v1430 = vld [vmem:[%s10 + $0x24] sm:$0xf]
  %v1431 = vld [vmem:[%s10 + $0x28] sm:$0xf]
  %v1432 = vld [vmem:[%s10 + $0x2c] sm:$0xf]
  %v1433 = vld [vmem:[%s10 + $0x30] sm:$0xf]
  %v1434 = vld [vmem:[%s10 + $0x34] sm:$0xf]
  %v1435 = vld [vmem:[%s10 + $0x38] sm:$0xf]
  %v1436 = vld [vmem:[%s10 + $0x3c] sm:$0xf]
  %v1437 = vld [vmem:[%s10 + $0x40] sm:$0xf]
  %v1438 = vld [vmem:[%s10 + $0x44] sm:$0xf]
  %v1439 = vld [vmem:[%s10 + $0x48] sm:$0xf]
  %v1440 = vld [vmem:[%s10 + $0x4c] sm:$0xf]
  %v1441 = vld [vmem:[%s10 + $0x50] sm:$0xf]
  %v1442 = vld [vmem:[%s10 + $0x54] sm:$0xf]
  %v1443 = vld [vmem:[%s10 + $0x58] sm:$0xf]
  %v1444 = vld [vmem:[%s10 + $0x5c] sm:$0xf]
  %v1445 = vld [vmem:[%s10 + $0x60] sm:$0xf]
  %v1446 = vld [vmem:[%s10 + $0x64] sm:$0xf]
  %v1447 = vld [vmem:[%s10 + $0x68] sm:$0xf]
  %v1448 = vld [vmem:[%s10 + $0x6c] sm:$0xf]
  %v1449 = vld [vmem:[%s10 + $0x70] sm:$0xf]
  %v1450 = vld [vmem:[%s10 + $0x74] sm:$0xf]
  %v1451 = vld [vmem:[%s10 + $0x78] sm:$0xf]
  %v1452 = vld [vmem:[%s10 + $0x7c] sm:$0xf]
  %v1453 = vld [vmem:[%s11] sm:$0x1]
  %v1455 = vlaneseq
  %v1456 = vshrl.u32 %v1455, 7
  %v1457 = vsub.s32 0, %v1456
  %v1458 = vrot.slane %v1453, %v1457
  %v1492 = vunpack.c.l.b16 %v1421
  %v1493 = vunpack.c.l.b16 %v1422
  %v1494 = vunpack.c.l.b16 %v1423
  %v1495 = vunpack.c.l.b16 %v1424
  %v1496 = vunpack.c.l.b16 %v1425
  %v1497 = vunpack.c.l.b16 %v1426
  %v1498 = vunpack.c.l.b16 %v1427
  %v1499 = vunpack.c.l.b16 %v1428
  %v1500 = vunpack.c.l.b16 %v1429
  %v1501 = vunpack.c.l.b16 %v1430
  %v1502 = vunpack.c.l.b16 %v1431
  %v1503 = vunpack.c.l.b16 %v1432
  %v1504 = vunpack.c.l.b16 %v1433
  %v1505 = vunpack.c.l.b16 %v1434
  %v1506 = vunpack.c.l.b16 %v1435
  %v1507 = vunpack.c.l.b16 %v1436
  %v1508 = vunpack.c.l.b16 %v1437
  %v1509 = vunpack.c.l.b16 %v1438
  %v1510 = vunpack.c.l.b16 %v1439
  %v1511 = vunpack.c.l.b16 %v1440
  %v1512 = vunpack.c.l.b16 %v1441
  %v1513 = vunpack.c.l.b16 %v1442
  %v1514 = vunpack.c.l.b16 %v1443
  %v1515 = vunpack.c.l.b16 %v1444
  %v1516 = vunpack.c.l.b16 %v1445
  %v1517 = vunpack.c.l.b16 %v1446
  %v1518 = vunpack.c.l.b16 %v1447
  %v1519 = vunpack.c.l.b16 %v1448
  %v1520 = vunpack.c.l.b16 %v1449
  %v1521 = vunpack.c.l.b16 %v1450
  %v1522 = vunpack.c.l.b16 %v1451
  %v1523 = vunpack.c.l.b16 %v1452
  %v1524 = vpack.c.b16 %v1493, %v1492
  %v1525 = vpack.c.b16 %v1495, %v1494
  %v1526 = vpack.c.b16 %v1497, %v1496
  %v1527 = vpack.c.b16 %v1499, %v1498
  %v1528 = vpack.c.b16 %v1501, %v1500
  %v1529 = vpack.c.b16 %v1503, %v1502
  %v1530 = vpack.c.b16 %v1505, %v1504
  %v1531 = vpack.c.b16 %v1507, %v1506
  %v1532 = vpack.c.b16 %v1509, %v1508
  %v1533 = vpack.c.b16 %v1511, %v1510
  %v1534 = vpack.c.b16 %v1513, %v1512
  %v1535 = vpack.c.b16 %v1515, %v1514
  %v1536 = vpack.c.b16 %v1517, %v1516
  %v1537 = vpack.c.b16 %v1519, %v1518
  %v1538 = vpack.c.b16 %v1521, %v1520
  %v1539 = vpack.c.b16 %v1523, %v1522
  %1556 = vmatprep.subr.bf16.mxu0 0
  %1557 = vmatpush1.bf16.msra.mxu0 %v1531
  %1558 = vmatprep.subr.bf16.mxu0 0
  %1559 = vmatpush1.bf16.msra.mxu0 %v1530
  %1560 = vmatprep.subr.bf16.mxu0 0
  %1561 = vmatpush1.bf16.msra.mxu0 %v1529
  %1562 = vmatprep.subr.bf16.mxu0 0
  %1563 = vmatpush1.bf16.msra.mxu0 %v1528
  %1564 = vmatprep.subr.bf16.mxu0 0
  %1565 = vmatpush1.bf16.msra.mxu0 %v1527
  %1566 = vmatprep.subr.bf16.mxu0 0
  %1567 = vmatpush1.bf16.msra.mxu0 %v1526
  %1568 = vmatprep.subr.bf16.mxu0 0
  %1569 = vmatpush1.bf16.msra.mxu0 %v1525
  %1570 = vmatprep.subr.bf16.mxu0 0
  %1571 = vmatpush1.bf16.msra.mxu0 %v1524
  %1572 = vmatprep.subr.bf16.mxu0 0
  %1573 = vmatpush2.bf16.msra.mxu0 %v1539
  %1574 = vmatprep.subr.bf16.mxu0 0
  %1575 = vmatpush2.bf16.msra.mxu0 %v1538
  %1576 = vmatprep.subr.bf16.mxu0 0
  %1577 = vmatpush2.bf16.msra.mxu0 %v1537
  %1578 = vmatprep.subr.bf16.mxu0 0
  %1579 = vmatpush2.bf16.msra.mxu0 %v1536
  %1580 = vmatprep.subr.bf16.mxu0 0
  %1581 = vmatpush2.bf16.msra.mxu0 %v1535
  %1582 = vmatprep.subr.bf16.mxu0 0
  %1583 = vmatpush2.bf16.msra.mxu0 %v1534
  %1584 = vmatprep.subr.bf16.mxu0 0
  %1585 = vmatpush2.bf16.msra.mxu0 %v1533
  %1586 = vmatprep.subr.bf16.mxu0 0
  %1587 = vmatpush2.bf16.msra.mxu0 %v1532
  %1588 = vmatprep.mubr.bf16.mxu0 %v1420
  %1589 = vmatmul.mubr.bf16.gmra.mxu0 %v1419
  %v1590 = vpop.f32.mrf.mxu0
  %v1591 = vadd.f32 %v1458, %v1590
  %v1592 = vpop.f32.mrf.mxu0
  %v1593 = vpop.f32.mrf.mxu0
  %v1594 = vpop.f32.mrf.mxu0
  %1595 = vdwg.mxu0
  %v1596 = vmax.f32 %v1591, 0.0
  %v1597 = vpack.c.bf16 %v1596, %v1596
  %v1598 = vld [vmem:[%s12] sm:$0xf]
  %v1599 = vld [vmem:[%s12 + $0x4] sm:$0xf]
  %v1600 = vld [vmem:[%s12 + $0x8] sm:$0xf]
  %v1601 = vld [vmem:[%s12 + $0xc] sm:$0xf]
  %v1602 = vld [vmem:[%s12 + $0x10] sm:$0xf]
  %v1603 = vld [vmem:[%s12 + $0x14] sm:$0xf]
  %v1604 = vld [vmem:[%s12 + $0x18] sm:$0xf]
  %v1605 = vld [vmem:[%s12 + $0x1c] sm:$0xf]
  %v1606 = vld [vmem:[%s13] sm:$0x1]
  %v1608 = vlaneseq
  %v1609 = vshrl.u32 %v1608, 7
  %v1610 = vsub.s32 0, %v1609
  %v1611 = vrot.slane %v1606, %v1610
  %v1621 = vunpack.c.l.b16 %v1598
  %v1622 = vunpack.c.l.b16 %v1599
  %v1623 = vunpack.c.l.b16 %v1600
  %v1624 = vunpack.c.l.b16 %v1601
  %v1625 = vunpack.c.l.b16 %v1602
  %v1626 = vunpack.c.l.b16 %v1603
  %v1627 = vunpack.c.l.b16 %v1604
  %v1628 = vunpack.c.l.b16 %v1605
  %v1629 = vpack.c.b16 %v1622, %v1621
  %v1630 = vpack.c.b16 %v1624, %v1623
  %v1631 = vpack.c.b16 %v1626, %v1625
  %v1632 = vpack.c.b16 %v1628, %v1627
  %vm1637 = vcmask 523264
  %v1639 = vsel %vm1637, %v1597, 0
  %1641 = vmatprep.subr.bf16.mxu0 0
  %1642 = vmatpush1.bf16.msra.mxu0 0
  %1643 = vmatprep.subr.bf16.mxu0 0
  %1644 = vmatpush1.bf16.msra.mxu0 0
  %1645 = vmatprep.subr.bf16.mxu0 0
  %1646 = vmatpush1.bf16.msra.mxu0 0
  %1647 = vmatprep.subr.bf16.mxu0 0
  %1648 = vmatpush1.bf16.msra.mxu0 0
  %1649 = vmatprep.subr.bf16.mxu0 0
  %1650 = vmatpush1.bf16.msra.mxu0 %v1632
  %1651 = vmatprep.subr.bf16.mxu0 0
  %1652 = vmatpush1.bf16.msra.mxu0 %v1631
  %1653 = vmatprep.subr.bf16.mxu0 0
  %1654 = vmatpush1.bf16.msra.mxu0 %v1630
  %1655 = vmatprep.subr.bf16.mxu0 0
  %1656 = vmatpush1.bf16.msra.mxu0 %v1629
  %1657 = vmatprep.subr.bf16.mxu0 0
  %1658 = vmatpush2.bf16.msra.mxu0 0
  %1659 = vmatprep.subr.bf16.mxu0 0
  %1660 = vmatpush2.bf16.msra.mxu0 0
  %1661 = vmatprep.subr.bf16.mxu0 0
  %1662 = vmatpush2.bf16.msra.mxu0 0
  %1663 = vmatprep.subr.bf16.mxu0 0
  %1664 = vmatpush2.bf16.msra.mxu0 0
  %1665 = vmatprep.subr.bf16.mxu0 0
  %1666 = vmatpush2.bf16.msra.mxu0 0
  %1667 = vmatprep.subr.bf16.mxu0 0
  %1668 = vmatpush2.bf16.msra.mxu0 0
  %1669 = vmatprep.subr.bf16.mxu0 0
  %1670 = vmatpush2.bf16.msra.mxu0 0
  %1671 = vmatprep.subr.bf16.mxu0 0
  %1672 = vmatpush2.bf16.msra.mxu0 0
  %1673 = vmatprep.mubr.bf16.mxu0 0
  %1674 = vmatmul.mubr.bf16.gmra.mxu0 %v1639
  %v1675 = vpop.f32.mrf.mxu0
  %v1676 = vadd.f32 %v1611, %v1675
  %v1677 = vpop.f32.mrf.mxu0
  %v1678 = vpop.f32.mrf.mxu0
  %v1679 = vpop.f32.mrf.mxu0
  %1680 = vdwg.mxu0
  %1681 = vst [vmem:[%s14] sm:$0xff] %v1676
  // Predicated region
  $region58: #{forgery_detector_forward.1} parent=0 // pred_check
    _
  $region59: #{forgery_detector_forward.1} parent=0 // pred_check_branch
    %1683 = sbr.rel (0) target = $region61
  $region60: #{forgery_detector_forward.1} parent=0 // pred_region
    _
  $region61: #{forgery_detector_forward.1} parent=0 // pred_fallthru
    _
  // Predicated region
  $region62: #{forgery_detector_forward.1} parent=0 // pred_check
    _
  $region63: #{forgery_detector_forward.1} parent=0 // pred_check_branch
    %1685 = sbr.rel (0) target = $region65
  $region64: #{forgery_detector_forward.1} parent=0 // pred_region
    _
  $region65: #{forgery_detector_forward.1} parent=0 // pred_fallthru
    _
  // Predicated region
  $region66: #{forgery_detector_forward.1} parent=0 // pred_check
    _
  $region67: #{forgery_detector_forward.1} parent=0 // pred_check_branch
    %1687 = sbr.rel (0) target = $region69
  $region68: #{forgery_detector_forward.1} parent=0 // pred_region
    _
  $region69: #{forgery_detector_forward.1} parent=0 // pred_fallthru
    _
  // Predicated region
  $region70: #{forgery_detector_forward.1} parent=0 // pred_check
    _
  $region71: #{forgery_detector_forward.1} parent=0 // pred_check_branch
    %1689 = sbr.rel (0) target = $region73
  $region72: #{forgery_detector_forward.1} parent=0 // pred_region
    _
  $region73: #{forgery_detector_forward.1} parent=0 // pred_fallthru
    _

</llo_original>
